<compile_context>
chip_gen: v5e
topology: v5e:2x2
jax: 0.10.0
libtpu: 0.0.40
codegen_flags: <defaults>
</compile_context>

<pallas_src>
import jax
import jax.numpy as jnp
from jax import lax
from jax.experimental import pallas as pl
from jax.experimental.pallas import tpu as pltpu

K = 3  # kernel_size of KAM


# ------------------------------- forward -----------------------------------

def kam_forward(x, wqk, weight, temperature):
    """x: (B,C,H,W) f32 NCHW; wqk: (2C,C,K,K); weight: (C,C,K,K); temperature: scalar."""
    B, C, H, W = x.shape
    assert H % K == 0 and W % K == 0, "stride-K qk conv needs H,W divisible by K"
    H2, W2 = H // K, W // K
    S2 = H2 * W2
    CK2 = C * K * K              # 36: used for both (c,kh,kw) and (kh,kw,c) orders
    D = 2 * K - 1                # 5
    PAD = (K - 1) * W2 + (K - 1)  # max |flat spatial shift| for the q stack
    HW = H * W
    f32 = jnp.float32
    x = x.astype(f32)

    # ---------------- host-side input prep (raw inputs / parameters only) ----
    # im2col for the stride-K qk conv: rows s=(h2,w2), cols (c,kh,kw)
    xp = x.reshape(B, C, H2, K, W2, K).transpose(0, 2, 4, 1, 3, 5).reshape(B, S2, CK2)
    # fused q/k projection weight: (CK2, 2C)
    wqk_mat = wqk.reshape(2 * C, CK2).T.astype(f32)
    # weight in (kh, kw, c_in) x c_out flat order; serves BOTH as the conv weight of
    # the attn->kernel stage and as the static kernel added at the end.
    w2 = jnp.transpose(weight.astype(f32), (2, 3, 1, 0)).reshape(CK2, C)
    # transposed im2col of zero-padded x for the final per-sample conv:
    # rows (kh, kw, c_in), cols h*W+w  -> keeps H*W on the lane axis (lane-dense out).
    p = K // 2
    xpad = jnp.pad(x, ((0, 0), (0, 0), (p, p), (p, p)))
    xcolT = jnp.stack([xpad[:, :, kh:kh + H, kw:kw + W]
                       for kh in range(K) for kw in range(K)],
                      axis=1).reshape(B, CK2, HW)
    temp = jnp.reshape(jnp.asarray(temperature, f32), (1,))

    # ------------------------------ fused kernel -----------------------------
    def kernel(xp_ref, xcolT_ref, wqk_ref, w2_ref, temp_ref, out_ref,
               qz_ref, qd_ref, g_ref):
        eps = 1e-12
        # stage 1: fused q/k projection + per-sample full-tensor L2 normalization
        qk = jnp.dot(xp_ref[0], wqk_ref[...], preferred_element_type=f32)  # (S2, 2C)
        q = qk[:, :C]
        k = qk[:, C:]
        qs = jnp.sum(jnp.sum(q * q, axis=0, keepdims=True), axis=1, keepdims=True)
        ks = jnp.sum(jnp.sum(k * k, axis=0, keepdims=True), axis=1, keepdims=True)
        qn = q * (1.0 / jnp.maximum(jnp.sqrt(qs), eps))   # (S2, C)
        kn = k * (1.0 / jnp.maximum(jnp.sqrt(ks), eps))   # (S2, C)
        kT = kn.T                                         # (C, S2)

        # stage 2: attn[ck,cq,i,j] = sum_{y,x} k[ck,y,x] * qpad[cq, y+i-(K-1), x+j-(K-1)]
        # shifted-q stack via flat (row) shifts of a zero-padded copy; x-wrap masked.
        qz_ref[...] = jnp.zeros(qz_ref.shape, f32)
        qz_ref[PAD:PAD + S2, :] = qn
        row = lax.broadcasted_iota(jnp.int32, (S2, C), 0)
        xpos = row % W2
        for i in range(D):
            for j in range(D):
                di, dj = i - (K - 1), j - (K - 1)
                off = di * W2 + dj
                sl = qz_ref[PAD + off:PAD + off + S2, :]          # (S2, C)
                if dj != 0:
                    sl = jnp.where((xpos + dj >= 0) & (xpos + dj < W2), sl, 0.0)
                qd_ref[:, (i * D + j) * C:(i * D + j + 1) * C] = sl
        # attnM[ck, (i*D+j)*C + cq] = attn[ck, cq, i, j]
        attnM = jnp.dot(kT, qd_ref[...], preferred_element_type=f32)  # (C, D*D*C)

        # stage 3: dynamic kernel = weight + normalize(conv(attn, weight)) * temperature
        # im2col of attn assembled in VMEM: rows (kh,kw,ck), cols (di,dj,cq)
        for kh in range(K):
            for kw in range(K):
                r0 = (kh * K + kw) * C
                for dip in range(K):
                    c0 = ((kh + dip) * D + kw) * C
                    g_ref[r0:r0 + C, dip * K * C:(dip + 1) * K * C] = \
                        attnM[:, c0:c0 + K * C]
        akmT = jnp.dot(g_ref[...], w2_ref[...], preferred_element_type=f32)  # (CK2, C)
        colnorm = jnp.sqrt(jnp.sum(akmT * akmT, axis=0, keepdims=True))      # (1, C)
        scale = temp_ref[0] / jnp.maximum(colnorm, eps)
        akT = w2_ref[...] + akmT * scale       # (CK2, C): rows (kh,kw,ck), cols c_out
        ak = akT.T                             # (C, CK2)

        # stage 4: per-sample conv (single lane-dense matmul, H*W on lanes) + ReLU
        o = jnp.dot(ak, xcolT_ref[0], preferred_element_type=f32)   # (C, H*W)
        out_ref[0] = jnp.maximum(o, 0.0)

    flops = 2 * B * (S2 * CK2 * 2 * C + C * S2 * D * D * C
                     + CK2 * CK2 * C + C * CK2 * HW)
    bytes_accessed = 4 * (B * (S2 * CK2 + CK2 * HW + C * HW)
                          + CK2 * 2 * C + CK2 * C)

    out3 = pl.pallas_call(
        kernel,
        out_shape=jax.ShapeDtypeStruct((B, C, HW), f32),
        grid=(B,),
        in_specs=[
            pl.BlockSpec((1, S2, CK2), lambda b: (b, 0, 0)),
            pl.BlockSpec((1, CK2, HW), lambda b: (b, 0, 0)),
            pl.BlockSpec((CK2, 2 * C), lambda b: (0, 0)),
            pl.BlockSpec((CK2, C), lambda b: (0, 0)),
            pl.BlockSpec(memory_space=pltpu.MemorySpace.SMEM),
        ],
        out_specs=pl.BlockSpec((1, C, HW), lambda b: (b, 0, 0)),
        scratch_shapes=[
            pltpu.VMEM((S2 + 2 * PAD, C), f32),   # zero-padded q rows
            pltpu.VMEM((S2, D * D * C), f32),     # shifted-q stack
            pltpu.VMEM((CK2, CK2), f32),          # im2col of attn
        ],
        compiler_params=pltpu.CompilerParams(
            dimension_semantics=("parallel",)),
        cost_estimate=pl.CostEstimate(flops=flops, transcendentals=0,
                                      bytes_accessed=bytes_accessed),
    )(xp, xcolT, wqk_mat, w2, temp)

    return out3.reshape(B, C, H, W)  # free bitcast back to NCHW (no transpose)


# ------------------------ pure-JAX reference (check) ------------------------

def kam_reference(x, wqk, weight, temperature):
    B, C, H, W = x.shape
    prec = lax.Precision.HIGHEST
    dn = ('NCHW', 'OIHW', 'NCHW')
    qk = lax.conv_general_dilated(x, wqk, (K, K), 'VALID',
                                  dimension_numbers=dn, precision=prec)
    q, k = qk[:, :C], qk[:, C:]
    H2, W2 = q.shape[2], q.shape[3]
    qf = q.reshape(B, -1)
    kf = k.reshape(B, -1)
    qf = qf / jnp.maximum(jnp.linalg.norm(qf, axis=-1, keepdims=True), 1e-12)
    kf = kf / jnp.maximum(jnp.linalg.norm(kf, axis=-1, keepdims=True), 1e-12)
    q = qf.reshape(B, C, H2, W2)
    k = kf.reshape(B, C, H2, W2)
    D = 2 * K - 1
    qp = jnp.pad(q, ((0, 0), (0, 0), (K - 1, K - 1), (K - 1, K - 1)))
    attn = jnp.zeros((B, C, C, D, D), jnp.float32)
    for i in range(D):
        for j in range(D):
            qs = qp[:, :, i:i + H2, j:j + W2]
            attn = attn.at[:, :, :, i, j].set(
                jnp.einsum('bkyx,bqyx->bkq', k, qs, precision=prec))
    ak = lax.conv_general_dilated(attn.reshape(B * C, C, D, D), weight, (1, 1), 'VALID',
                                  dimension_numbers=dn, precision=prec)
    ak = ak.reshape(B, C, C, K, K).transpose(0, 2, 1, 3, 4)
    akf = ak.reshape(B, C, -1)
    akf = akf / jnp.maximum(jnp.linalg.norm(akf, axis=-1, keepdims=True), 1e-12)
    ak = akf.reshape(B, C, C, K, K)
    ak = weight[None] + ak * temperature
    pd = K // 2
    outs = [lax.conv_general_dilated(x[b:b + 1], ak[b], (1, 1), ((pd, pd), (pd, pd)),
                                     dimension_numbers=dn, precision=prec)
            for b in range(B)]
    return jnp.maximum(jnp.concatenate(outs, axis=0), 0.0)


# ---------------------------------- main ------------------------------------

if __name__ == "__main__":
    key = jax.random.PRNGKey(0)
    B, C, H, W = 2, 4, 12, 12   # n_feat=4; H,W divisible by 3 for the stride-3 qk conv
    k1, k2, k3 = jax.random.split(key, 3)
    x = jax.random.normal(k1, (B, C, H, W), jnp.float32)
    fan_in = C * K * K
    # deterministic synthetic params (shapes match the PyTorch module; bias=False)
    wqk = jax.random.normal(k2, (2 * C, C, K, K), jnp.float32) * jnp.sqrt(2.0 / fan_in)
    weight = jax.random.normal(k3, (C, C, K, K), jnp.float32) * jnp.sqrt(2.0 / fan_in) * 0.1
    # nn.Parameter init is zeros; use a nonzero value so the dynamic-kernel path is exercised
    temperature = jnp.float32(0.5)

    out = jax.jit(kam_forward)(x, wqk, weight, temperature)
    out = jax.block_until_ready(out)

    ref = kam_reference(x, wqk, weight, temperature)
    assert out.shape == (B, C, H, W)
    assert jnp.allclose(out, ref, rtol=1e-2, atol=1e-3), float(jnp.max(jnp.abs(out - ref)))
    print("KERNEL_OK")
</pallas_src>

<mosaic_0001>
module attributes {stable_mosaic.version = 11 : i64} {
  func.func @kernel(%arg0: i32, %arg1: memref<1x16x36xf32, #tpu.memory_space<vmem>>, %arg2: memref<1x36x144xf32, #tpu.memory_space<vmem>>, %arg3: memref<36x8xf32, #tpu.memory_space<vmem>>, %arg4: memref<36x4xf32, #tpu.memory_space<vmem>>, %arg5: memref<1xf32, #tpu.memory_space<smem>>, %arg6: memref<1x4x144xf32, #tpu.memory_space<vmem>>, %arg7: memref<36x4xf32, #tpu.memory_space<vmem>>, %arg8: memref<16x100xf32, #tpu.memory_space<vmem>>, %arg9: memref<36x36xf32, #tpu.memory_space<vmem>>) attributes {dimension_semantics = [#tpu.dimension_semantics<parallel>], iteration_bounds = array<i64: 2>, scalar_prefetch = 0 : i64, scratch_operands = 3 : i64, tpu.core_type = #tpu.core_type<tc>, window_params = [{transform_indices = @transform_0, window_bounds = array<i64: 1, 16, 36>}, {transform_indices = @transform_1, window_bounds = array<i64: 1, 36, 144>}, {pipeline_mode = #tpu.pipeline_mode<synchronous>, transform_indices = @transform_2, window_bounds = array<i64: 36, 8>}, {pipeline_mode = #tpu.pipeline_mode<synchronous>, transform_indices = @transform_3, window_bounds = array<i64: 36, 4>}, {transform_indices = @transform_4, window_bounds = array<i64: 1>}, {transform_indices = @transform_5, window_bounds = array<i64: 1, 4, 144>}]} {
    %c0 = arith.constant 0 : index
    %c0_0 = arith.constant 0 : index
    %c0_1 = arith.constant 0 : index
    %0 = vector.load %arg1[%c0, %c0_0, %c0_1] : memref<1x16x36xf32, #tpu.memory_space<vmem>>, vector<1x16x36xf32>
    %1 = vector.shape_cast %0 : vector<1x16x36xf32> to vector<16x36xf32>
    %c0_2 = arith.constant 0 : index
    %c0_3 = arith.constant 0 : index
    %2 = vector.load %arg3[%c0_2, %c0_3] : memref<36x8xf32, #tpu.memory_space<vmem>>, vector<36x8xf32>
    %cst = arith.constant dense<0.000000e+00> : vector<16x8xf32>
    %3 = tpu.matmul %1, %2, %cst {dimension_numbers = #tpu.dot_dimension_numbers<[1], [0], [0], [1], [0, 0, 1, 1], [], []>} : vector<16x36xf32>, vector<36x8xf32>, vector<16x8xf32> -> vector<16x8xf32>
    %4 = vector.extract_strided_slice %3 {offsets = [0, 0], sizes = [16, 4], strides = [1, 1]} : vector<16x8xf32> to vector<16x4xf32>
    %5 = vector.extract_strided_slice %3 {offsets = [0, 4], sizes = [16, 4], strides = [1, 1]} : vector<16x8xf32> to vector<16x4xf32>
    %6 = arith.mulf %4, %4 : vector<16x4xf32>
    %cst_4 = arith.constant dense<0.000000e+00> : vector<4xf32>
    %7 = vector.multi_reduction <add>, %6, %cst_4 [0] : vector<16x4xf32> to vector<4xf32>
    %8 = vector.shape_cast %7 : vector<4xf32> to vector<1x4xf32>
    %cst_5 = arith.constant dense<0.000000e+00> : vector<1xf32>
    %9 = vector.multi_reduction <add>, %8, %cst_5 [1] : vector<1x4xf32> to vector<1xf32>
    %10 = vector.shape_cast %9 : vector<1xf32> to vector<1x1xf32>
    %11 = arith.mulf %5, %5 : vector<16x4xf32>
    %cst_6 = arith.constant dense<0.000000e+00> : vector<4xf32>
    %12 = vector.multi_reduction <add>, %11, %cst_6 [0] : vector<16x4xf32> to vector<4xf32>
    %13 = vector.shape_cast %12 : vector<4xf32> to vector<1x4xf32>
    %cst_7 = arith.constant dense<0.000000e+00> : vector<1xf32>
    %14 = vector.multi_reduction <add>, %13, %cst_7 [1] : vector<1x4xf32> to vector<1xf32>
    %15 = vector.shape_cast %14 : vector<1xf32> to vector<1x1xf32>
    %16 = math.sqrt %10 : vector<1x1xf32>
    %cst_8 = arith.constant 9.99999996E-13 : f32
    %17 = vector.broadcast %cst_8 : f32 to vector<1x1xf32>
    %18 = arith.maximumf %16, %17 : vector<1x1xf32>
    %cst_9 = arith.constant 1.000000e+00 : f32
    %19 = vector.broadcast %cst_9 : f32 to vector<1x1xf32>
    %20 = arith.divf %19, %18 : vector<1x1xf32>
    %21 = vector.broadcast %20 : vector<1x1xf32> to vector<16x4xf32>
    %22 = arith.mulf %4, %21 : vector<16x4xf32>
    %23 = math.sqrt %15 : vector<1x1xf32>
    %cst_10 = arith.constant 9.99999996E-13 : f32
    %24 = vector.broadcast %cst_10 : f32 to vector<1x1xf32>
    %25 = arith.maximumf %23, %24 : vector<1x1xf32>
    %cst_11 = arith.constant 1.000000e+00 : f32
    %26 = vector.broadcast %cst_11 : f32 to vector<1x1xf32>
    %27 = arith.divf %26, %25 : vector<1x1xf32>
    %28 = vector.broadcast %27 : vector<1x1xf32> to vector<16x4xf32>
    %29 = arith.mulf %5, %28 : vector<16x4xf32>
    %30 = tpu.transpose %29, [1, 0] : vector<16x4xf32> -> vector<4x16xf32>
    %cst_12 = arith.constant 0.000000e+00 : f32
    %31 = vector.broadcast %cst_12 : f32 to vector<36x4xf32>
    %c0_13 = arith.constant 0 : index
    %c0_14 = arith.constant 0 : index
    %32 = vector.load %arg7[%c0_13, %c0_14] : memref<36x4xf32, #tpu.memory_space<vmem>>, vector<36x4xf32>
    tpu.vector_store %arg7[%c0_13, %c0_14], %31 {strides = array<i32>} : memref<36x4xf32, #tpu.memory_space<vmem>>, vector<36x4xf32>,
    %c10 = arith.constant 10 : index
    %c0_15 = arith.constant 0 : index
    %33 = vector.load %arg7[%c10, %c0_15] : memref<36x4xf32, #tpu.memory_space<vmem>>, vector<16x4xf32>
    tpu.vector_store %arg7[%c10, %c0_15], %22 {strides = array<i32>} : memref<36x4xf32, #tpu.memory_space<vmem>>, vector<16x4xf32>,
    %34 = tpu.iota {dimensions = array<i32: 0>} : vector<16x4xi32>
    %c4_i32 = arith.constant 4 : i32
    %c0_i32 = arith.constant 0 : i32
    %35 = arith.cmpi eq, %c4_i32, %c0_i32 : i32
    %c1_i32 = arith.constant 1 : i32
    %36 = arith.select %35, %c1_i32, %c4_i32 : i32
    %37 = vector.broadcast %36 : i32 to vector<16x4xi32>
    %38 = arith.remsi %34, %37 : vector<16x4xi32>
    %c0_i32_16 = arith.constant 0 : i32
    %39 = vector.broadcast %c0_i32_16 : i32 to vector<16x4xi32>
    %40 = arith.cmpi ne, %38, %39 : vector<16x4xi32>
    %c0_i32_17 = arith.constant 0 : i32
    %41 = vector.broadcast %c0_i32_17 : i32 to vector<16x4xi32>
    %42 = arith.cmpi slt, %38, %41 : vector<16x4xi32>
    %c0_i32_18 = arith.constant 0 : i32
    %43 = arith.cmpi slt, %36, %c0_i32_18 : i32
    %44 = vector.broadcast %43 : i1 to vector<16x4xi1>
    %45 = vector.broadcast %44 : vector<16x4xi1> to vector<16x4xi1>
    %46 = arith.xori %42, %45 : vector<16x4xi1>
    %47 = arith.andi %46, %40 : vector<16x4xi1>
    %48 = vector.broadcast %36 : i32 to vector<16x4xi32>
    %49 = arith.addi %38, %48 : vector<16x4xi32>
    %50 = arith.select %47, %49, %38 : vector<16x4xi1>, vector<16x4xi32>
    %c0_19 = arith.constant 0 : index
    %c0_20 = arith.constant 0 : index
    %51 = vector.load %arg7[%c0_19, %c0_20] : memref<36x4xf32, #tpu.memory_space<vmem>>, vector<16x4xf32>
    %c-2_i32 = arith.constant -2 : i32
    %52 = vector.broadcast %c-2_i32 : i32 to vector<16x4xi32>
    %53 = arith.addi %50, %52 : vector<16x4xi32>
    %c0_i32_21 = arith.constant 0 : i32
    %54 = vector.broadcast %c0_i32_21 : i32 to vector<16x4xi32>
    %55 = arith.cmpi sge, %53, %54 : vector<16x4xi32>
    %c-2_i32_22 = arith.constant -2 : i32
    %56 = vector.broadcast %c-2_i32_22 : i32 to vector<16x4xi32>
    %57 = arith.addi %50, %56 : vector<16x4xi32>
    %c4_i32_23 = arith.constant 4 : i32
    %58 = vector.broadcast %c4_i32_23 : i32 to vector<16x4xi32>
    %59 = arith.cmpi slt, %57, %58 : vector<16x4xi32>
    %60 = arith.andi %55, %59 : vector<16x4xi1>
    %cst_24 = arith.constant 0.000000e+00 : f32
    %61 = vector.broadcast %cst_24 : f32 to vector<16x4xf32>
    %62 = arith.select %60, %51, %61 : vector<16x4xi1>, vector<16x4xf32>
    %c0_25 = arith.constant 0 : index
    %c0_26 = arith.constant 0 : index
    %63 = vector.load %arg8[%c0_25, %c0_26] : memref<16x100xf32, #tpu.memory_space<vmem>>, vector<16x4xf32>
    tpu.vector_store %arg8[%c0_25, %c0_26], %62 {strides = array<i32>} : memref<16x100xf32, #tpu.memory_space<vmem>>, vector<16x4xf32>,
    %c1 = arith.constant 1 : index
    %c0_27 = arith.constant 0 : index
    %64 = vector.load %arg7[%c1, %c0_27] : memref<36x4xf32, #tpu.memory_space<vmem>>, vector<16x4xf32>
    %c-1_i32 = arith.constant -1 : i32
    %65 = vector.broadcast %c-1_i32 : i32 to vector<16x4xi32>
    %66 = arith.addi %50, %65 : vector<16x4xi32>
    %c0_i32_28 = arith.constant 0 : i32
    %67 = vector.broadcast %c0_i32_28 : i32 to vector<16x4xi32>
    %68 = arith.cmpi sge, %66, %67 : vector<16x4xi32>
    %c-1_i32_29 = arith.constant -1 : i32
    %69 = vector.broadcast %c-1_i32_29 : i32 to vector<16x4xi32>
    %70 = arith.addi %50, %69 : vector<16x4xi32>
    %c4_i32_30 = arith.constant 4 : i32
    %71 = vector.broadcast %c4_i32_30 : i32 to vector<16x4xi32>
    %72 = arith.cmpi slt, %70, %71 : vector<16x4xi32>
    %73 = arith.andi %68, %72 : vector<16x4xi1>
    %cst_31 = arith.constant 0.000000e+00 : f32
    %74 = vector.broadcast %cst_31 : f32 to vector<16x4xf32>
    %75 = arith.select %73, %64, %74 : vector<16x4xi1>, vector<16x4xf32>
    %c0_32 = arith.constant 0 : index
    %c4 = arith.constant 4 : index
    %76 = vector.load %arg8[%c0_32, %c4] : memref<16x100xf32, #tpu.memory_space<vmem>>, vector<16x4xf32>
    tpu.vector_store %arg8[%c0_32, %c4], %75 {strides = array<i32>} : memref<16x100xf32, #tpu.memory_space<vmem>>, vector<16x4xf32>,
    %c2 = arith.constant 2 : index
    %c0_33 = arith.constant 0 : index
    %77 = vector.load %arg7[%c2, %c0_33] : memref<36x4xf32, #tpu.memory_space<vmem>>, vector<16x4xf32>
    %c0_34 = arith.constant 0 : index
    %c8 = arith.constant 8 : index
    %78 = vector.load %arg8[%c0_34, %c8] : memref<16x100xf32, #tpu.memory_space<vmem>>, vector<16x4xf32>
    tpu.vector_store %arg8[%c0_34, %c8], %77 {strides = array<i32>} : memref<16x100xf32, #tpu.memory_space<vmem>>, vector<16x4xf32>,
    %c3 = arith.constant 3 : index
    %c0_35 = arith.constant 0 : index
    %79 = vector.load %arg7[%c3, %c0_35] : memref<36x4xf32, #tpu.memory_space<vmem>>, vector<16x4xf32>
    %c1_i32_36 = arith.constant 1 : i32
    %80 = vector.broadcast %c1_i32_36 : i32 to vector<16x4xi32>
    %81 = arith.addi %50, %80 : vector<16x4xi32>
    %c0_i32_37 = arith.constant 0 : i32
    %82 = vector.broadcast %c0_i32_37 : i32 to vector<16x4xi32>
    %83 = arith.cmpi sge, %81, %82 : vector<16x4xi32>
    %c1_i32_38 = arith.constant 1 : i32
    %84 = vector.broadcast %c1_i32_38 : i32 to vector<16x4xi32>
    %85 = arith.addi %50, %84 : vector<16x4xi32>
    %c4_i32_39 = arith.constant 4 : i32
    %86 = vector.broadcast %c4_i32_39 : i32 to vector<16x4xi32>
    %87 = arith.cmpi slt, %85, %86 : vector<16x4xi32>
    %88 = arith.andi %83, %87 : vector<16x4xi1>
    %cst_40 = arith.constant 0.000000e+00 : f32
    %89 = vector.broadcast %cst_40 : f32 to vector<16x4xf32>
    %90 = arith.select %88, %79, %89 : vector<16x4xi1>, vector<16x4xf32>
    %c0_41 = arith.constant 0 : index
    %c12 = arith.constant 12 : index
    %91 = vector.load %arg8[%c0_41, %c12] : memref<16x100xf32, #tpu.memory_space<vmem>>, vector<16x4xf32>
    tpu.vector_store %arg8[%c0_41, %c12], %90 {strides = array<i32>} : memref<16x100xf32, #tpu.memory_space<vmem>>, vector<16x4xf32>,
    %c4_42 = arith.constant 4 : index
    %c0_43 = arith.constant 0 : index
    %92 = vector.load %arg7[%c4_42, %c0_43] : memref<36x4xf32, #tpu.memory_space<vmem>>, vector<16x4xf32>
    %c2_i32 = arith.constant 2 : i32
    %93 = vector.broadcast %c2_i32 : i32 to vector<16x4xi32>
    %94 = arith.addi %50, %93 : vector<16x4xi32>
    %c0_i32_44 = arith.constant 0 : i32
    %95 = vector.broadcast %c0_i32_44 : i32 to vector<16x4xi32>
    %96 = arith.cmpi sge, %94, %95 : vector<16x4xi32>
    %c2_i32_45 = arith.constant 2 : i32
    %97 = vector.broadcast %c2_i32_45 : i32 to vector<16x4xi32>
    %98 = arith.addi %50, %97 : vector<16x4xi32>
    %c4_i32_46 = arith.constant 4 : i32
    %99 = vector.broadcast %c4_i32_46 : i32 to vector<16x4xi32>
    %100 = arith.cmpi slt, %98, %99 : vector<16x4xi32>
    %101 = arith.andi %96, %100 : vector<16x4xi1>
    %cst_47 = arith.constant 0.000000e+00 : f32
    %102 = vector.broadcast %cst_47 : f32 to vector<16x4xf32>
    %103 = arith.select %101, %92, %102 : vector<16x4xi1>, vector<16x4xf32>
    %c0_48 = arith.constant 0 : index
    %c16 = arith.constant 16 : index
    %104 = vector.load %arg8[%c0_48, %c16] : memref<16x100xf32, #tpu.memory_space<vmem>>, vector<16x4xf32>
    tpu.vector_store %arg8[%c0_48, %c16], %103 {strides = array<i32>} : memref<16x100xf32, #tpu.memory_space<vmem>>, vector<16x4xf32>,
    %c4_49 = arith.constant 4 : index
    %c0_50 = arith.constant 0 : index
    %105 = vector.load %arg7[%c4_49, %c0_50] : memref<36x4xf32, #tpu.memory_space<vmem>>, vector<16x4xf32>
    %c-2_i32_51 = arith.constant -2 : i32
    %106 = vector.broadcast %c-2_i32_51 : i32 to vector<16x4xi32>
    %107 = arith.addi %50, %106 : vector<16x4xi32>
    %c0_i32_52 = arith.constant 0 : i32
    %108 = vector.broadcast %c0_i32_52 : i32 to vector<16x4xi32>
    %109 = arith.cmpi sge, %107, %108 : vector<16x4xi32>
    %c-2_i32_53 = arith.constant -2 : i32
    %110 = vector.broadcast %c-2_i32_53 : i32 to vector<16x4xi32>
    %111 = arith.addi %50, %110 : vector<16x4xi32>
    %c4_i32_54 = arith.constant 4 : i32
    %112 = vector.broadcast %c4_i32_54 : i32 to vector<16x4xi32>
    %113 = arith.cmpi slt, %111, %112 : vector<16x4xi32>
    %114 = arith.andi %109, %113 : vector<16x4xi1>
    %cst_55 = arith.constant 0.000000e+00 : f32
    %115 = vector.broadcast %cst_55 : f32 to vector<16x4xf32>
    %116 = arith.select %114, %105, %115 : vector<16x4xi1>, vector<16x4xf32>
    %c0_56 = arith.constant 0 : index
    %c20 = arith.constant 20 : index
    %117 = vector.load %arg8[%c0_56, %c20] : memref<16x100xf32, #tpu.memory_space<vmem>>, vector<16x4xf32>
    tpu.vector_store %arg8[%c0_56, %c20], %116 {strides = array<i32>} : memref<16x100xf32, #tpu.memory_space<vmem>>, vector<16x4xf32>,
    %c5 = arith.constant 5 : index
    %c0_57 = arith.constant 0 : index
    %118 = vector.load %arg7[%c5, %c0_57] : memref<36x4xf32, #tpu.memory_space<vmem>>, vector<16x4xf32>
    %c-1_i32_58 = arith.constant -1 : i32
    %119 = vector.broadcast %c-1_i32_58 : i32 to vector<16x4xi32>
    %120 = arith.addi %50, %119 : vector<16x4xi32>
    %c0_i32_59 = arith.constant 0 : i32
    %121 = vector.broadcast %c0_i32_59 : i32 to vector<16x4xi32>
    %122 = arith.cmpi sge, %120, %121 : vector<16x4xi32>
    %c-1_i32_60 = arith.constant -1 : i32
    %123 = vector.broadcast %c-1_i32_60 : i32 to vector<16x4xi32>
    %124 = arith.addi %50, %123 : vector<16x4xi32>
    %c4_i32_61 = arith.constant 4 : i32
    %125 = vector.broadcast %c4_i32_61 : i32 to vector<16x4xi32>
    %126 = arith.cmpi slt, %124, %125 : vector<16x4xi32>
    %127 = arith.andi %122, %126 : vector<16x4xi1>
    %cst_62 = arith.constant 0.000000e+00 : f32
    %128 = vector.broadcast %cst_62 : f32 to vector<16x4xf32>
    %129 = arith.select %127, %118, %128 : vector<16x4xi1>, vector<16x4xf32>
    %c0_63 = arith.constant 0 : index
    %c24 = arith.constant 24 : index
    %130 = vector.load %arg8[%c0_63, %c24] : memref<16x100xf32, #tpu.memory_space<vmem>>, vector<16x4xf32>
    tpu.vector_store %arg8[%c0_63, %c24], %129 {strides = array<i32>} : memref<16x100xf32, #tpu.memory_space<vmem>>, vector<16x4xf32>,
    %c6 = arith.constant 6 : index
    %c0_64 = arith.constant 0 : index
    %131 = vector.load %arg7[%c6, %c0_64] : memref<36x4xf32, #tpu.memory_space<vmem>>, vector<16x4xf32>
    %c0_65 = arith.constant 0 : index
    %c28 = arith.constant 28 : index
    %132 = vector.load %arg8[%c0_65, %c28] : memref<16x100xf32, #tpu.memory_space<vmem>>, vector<16x4xf32>
    tpu.vector_store %arg8[%c0_65, %c28], %131 {strides = array<i32>} : memref<16x100xf32, #tpu.memory_space<vmem>>, vector<16x4xf32>,
    %c7 = arith.constant 7 : index
    %c0_66 = arith.constant 0 : index
    %133 = vector.load %arg7[%c7, %c0_66] : memref<36x4xf32, #tpu.memory_space<vmem>>, vector<16x4xf32>
    %c1_i32_67 = arith.constant 1 : i32
    %134 = vector.broadcast %c1_i32_67 : i32 to vector<16x4xi32>
    %135 = arith.addi %50, %134 : vector<16x4xi32>
    %c0_i32_68 = arith.constant 0 : i32
    %136 = vector.broadcast %c0_i32_68 : i32 to vector<16x4xi32>
    %137 = arith.cmpi sge, %135, %136 : vector<16x4xi32>
    %c1_i32_69 = arith.constant 1 : i32
    %138 = vector.broadcast %c1_i32_69 : i32 to vector<16x4xi32>
    %139 = arith.addi %50, %138 : vector<16x4xi32>
    %c4_i32_70 = arith.constant 4 : i32
    %140 = vector.broadcast %c4_i32_70 : i32 to vector<16x4xi32>
    %141 = arith.cmpi slt, %139, %140 : vector<16x4xi32>
    %142 = arith.andi %137, %141 : vector<16x4xi1>
    %cst_71 = arith.constant 0.000000e+00 : f32
    %143 = vector.broadcast %cst_71 : f32 to vector<16x4xf32>
    %144 = arith.select %142, %133, %143 : vector<16x4xi1>, vector<16x4xf32>
    %c0_72 = arith.constant 0 : index
    %c32 = arith.constant 32 : index
    %145 = vector.load %arg8[%c0_72, %c32] : memref<16x100xf32, #tpu.memory_space<vmem>>, vector<16x4xf32>
    tpu.vector_store %arg8[%c0_72, %c32], %144 {strides = array<i32>} : memref<16x100xf32, #tpu.memory_space<vmem>>, vector<16x4xf32>,
    %c8_73 = arith.constant 8 : index
    %c0_74 = arith.constant 0 : index
    %146 = vector.load %arg7[%c8_73, %c0_74] : memref<36x4xf32, #tpu.memory_space<vmem>>, vector<16x4xf32>
    %c2_i32_75 = arith.constant 2 : i32
    %147 = vector.broadcast %c2_i32_75 : i32 to vector<16x4xi32>
    %148 = arith.addi %50, %147 : vector<16x4xi32>
    %c0_i32_76 = arith.constant 0 : i32
    %149 = vector.broadcast %c0_i32_76 : i32 to vector<16x4xi32>
    %150 = arith.cmpi sge, %148, %149 : vector<16x4xi32>
    %c2_i32_77 = arith.constant 2 : i32
    %151 = vector.broadcast %c2_i32_77 : i32 to vector<16x4xi32>
    %152 = arith.addi %50, %151 : vector<16x4xi32>
    %c4_i32_78 = arith.constant 4 : i32
    %153 = vector.broadcast %c4_i32_78 : i32 to vector<16x4xi32>
    %154 = arith.cmpi slt, %152, %153 : vector<16x4xi32>
    %155 = arith.andi %150, %154 : vector<16x4xi1>
    %cst_79 = arith.constant 0.000000e+00 : f32
    %156 = vector.broadcast %cst_79 : f32 to vector<16x4xf32>
    %157 = arith.select %155, %146, %156 : vector<16x4xi1>, vector<16x4xf32>
    %c0_80 = arith.constant 0 : index
    %c36 = arith.constant 36 : index
    %158 = vector.load %arg8[%c0_80, %c36] : memref<16x100xf32, #tpu.memory_space<vmem>>, vector<16x4xf32>
    tpu.vector_store %arg8[%c0_80, %c36], %157 {strides = array<i32>} : memref<16x100xf32, #tpu.memory_space<vmem>>, vector<16x4xf32>,
    %c8_81 = arith.constant 8 : index
    %c0_82 = arith.constant 0 : index
    %159 = vector.load %arg7[%c8_81, %c0_82] : memref<36x4xf32, #tpu.memory_space<vmem>>, vector<16x4xf32>
    %c-2_i32_83 = arith.constant -2 : i32
    %160 = vector.broadcast %c-2_i32_83 : i32 to vector<16x4xi32>
    %161 = arith.addi %50, %160 : vector<16x4xi32>
    %c0_i32_84 = arith.constant 0 : i32
    %162 = vector.broadcast %c0_i32_84 : i32 to vector<16x4xi32>
    %163 = arith.cmpi sge, %161, %162 : vector<16x4xi32>
    %c-2_i32_85 = arith.constant -2 : i32
    %164 = vector.broadcast %c-2_i32_85 : i32 to vector<16x4xi32>
    %165 = arith.addi %50, %164 : vector<16x4xi32>
    %c4_i32_86 = arith.constant 4 : i32
    %166 = vector.broadcast %c4_i32_86 : i32 to vector<16x4xi32>
    %167 = arith.cmpi slt, %165, %166 : vector<16x4xi32>
    %168 = arith.andi %163, %167 : vector<16x4xi1>
    %cst_87 = arith.constant 0.000000e+00 : f32
    %169 = vector.broadcast %cst_87 : f32 to vector<16x4xf32>
    %170 = arith.select %168, %159, %169 : vector<16x4xi1>, vector<16x4xf32>
    %c0_88 = arith.constant 0 : index
    %c40 = arith.constant 40 : index
    %171 = vector.load %arg8[%c0_88, %c40] : memref<16x100xf32, #tpu.memory_space<vmem>>, vector<16x4xf32>
    tpu.vector_store %arg8[%c0_88, %c40], %170 {strides = array<i32>} : memref<16x100xf32, #tpu.memory_space<vmem>>, vector<16x4xf32>,
    %c9 = arith.constant 9 : index
    %c0_89 = arith.constant 0 : index
    %172 = vector.load %arg7[%c9, %c0_89] : memref<36x4xf32, #tpu.memory_space<vmem>>, vector<16x4xf32>
    %c-1_i32_90 = arith.constant -1 : i32
    %173 = vector.broadcast %c-1_i32_90 : i32 to vector<16x4xi32>
    %174 = arith.addi %50, %173 : vector<16x4xi32>
    %c0_i32_91 = arith.constant 0 : i32
    %175 = vector.broadcast %c0_i32_91 : i32 to vector<16x4xi32>
    %176 = arith.cmpi sge, %174, %175 : vector<16x4xi32>
    %c-1_i32_92 = arith.constant -1 : i32
    %177 = vector.broadcast %c-1_i32_92 : i32 to vector<16x4xi32>
    %178 = arith.addi %50, %177 : vector<16x4xi32>
    %c4_i32_93 = arith.constant 4 : i32
    %179 = vector.broadcast %c4_i32_93 : i32 to vector<16x4xi32>
    %180 = arith.cmpi slt, %178, %179 : vector<16x4xi32>
    %181 = arith.andi %176, %180 : vector<16x4xi1>
    %cst_94 = arith.constant 0.000000e+00 : f32
    %182 = vector.broadcast %cst_94 : f32 to vector<16x4xf32>
    %183 = arith.select %181, %172, %182 : vector<16x4xi1>, vector<16x4xf32>
    %c0_95 = arith.constant 0 : index
    %c44 = arith.constant 44 : index
    %184 = vector.load %arg8[%c0_95, %c44] : memref<16x100xf32, #tpu.memory_space<vmem>>, vector<16x4xf32>
    tpu.vector_store %arg8[%c0_95, %c44], %183 {strides = array<i32>} : memref<16x100xf32, #tpu.memory_space<vmem>>, vector<16x4xf32>,
    %c10_96 = arith.constant 10 : index
    %c0_97 = arith.constant 0 : index
    %185 = vector.load %arg7[%c10_96, %c0_97] : memref<36x4xf32, #tpu.memory_space<vmem>>, vector<16x4xf32>
    %c0_98 = arith.constant 0 : index
    %c48 = arith.constant 48 : index
    %186 = vector.load %arg8[%c0_98, %c48] : memref<16x100xf32, #tpu.memory_space<vmem>>, vector<16x4xf32>
    tpu.vector_store %arg8[%c0_98, %c48], %185 {strides = array<i32>} : memref<16x100xf32, #tpu.memory_space<vmem>>, vector<16x4xf32>,
    %c11 = arith.constant 11 : index
    %c0_99 = arith.constant 0 : index
    %187 = vector.load %arg7[%c11, %c0_99] : memref<36x4xf32, #tpu.memory_space<vmem>>, vector<16x4xf32>
    %c1_i32_100 = arith.constant 1 : i32
    %188 = vector.broadcast %c1_i32_100 : i32 to vector<16x4xi32>
    %189 = arith.addi %50, %188 : vector<16x4xi32>
    %c0_i32_101 = arith.constant 0 : i32
    %190 = vector.broadcast %c0_i32_101 : i32 to vector<16x4xi32>
    %191 = arith.cmpi sge, %189, %190 : vector<16x4xi32>
    %c1_i32_102 = arith.constant 1 : i32
    %192 = vector.broadcast %c1_i32_102 : i32 to vector<16x4xi32>
    %193 = arith.addi %50, %192 : vector<16x4xi32>
    %c4_i32_103 = arith.constant 4 : i32
    %194 = vector.broadcast %c4_i32_103 : i32 to vector<16x4xi32>
    %195 = arith.cmpi slt, %193, %194 : vector<16x4xi32>
    %196 = arith.andi %191, %195 : vector<16x4xi1>
    %cst_104 = arith.constant 0.000000e+00 : f32
    %197 = vector.broadcast %cst_104 : f32 to vector<16x4xf32>
    %198 = arith.select %196, %187, %197 : vector<16x4xi1>, vector<16x4xf32>
    %c0_105 = arith.constant 0 : index
    %c52 = arith.constant 52 : index
    %199 = vector.load %arg8[%c0_105, %c52] : memref<16x100xf32, #tpu.memory_space<vmem>>, vector<16x4xf32>
    tpu.vector_store %arg8[%c0_105, %c52], %198 {strides = array<i32>} : memref<16x100xf32, #tpu.memory_space<vmem>>, vector<16x4xf32>,
    %c12_106 = arith.constant 12 : index
    %c0_107 = arith.constant 0 : index
    %200 = vector.load %arg7[%c12_106, %c0_107] : memref<36x4xf32, #tpu.memory_space<vmem>>, vector<16x4xf32>
    %c2_i32_108 = arith.constant 2 : i32
    %201 = vector.broadcast %c2_i32_108 : i32 to vector<16x4xi32>
    %202 = arith.addi %50, %201 : vector<16x4xi32>
    %c0_i32_109 = arith.constant 0 : i32
    %203 = vector.broadcast %c0_i32_109 : i32 to vector<16x4xi32>
    %204 = arith.cmpi sge, %202, %203 : vector<16x4xi32>
    %c2_i32_110 = arith.constant 2 : i32
    %205 = vector.broadcast %c2_i32_110 : i32 to vector<16x4xi32>
    %206 = arith.addi %50, %205 : vector<16x4xi32>
    %c4_i32_111 = arith.constant 4 : i32
    %207 = vector.broadcast %c4_i32_111 : i32 to vector<16x4xi32>
    %208 = arith.cmpi slt, %206, %207 : vector<16x4xi32>
    %209 = arith.andi %204, %208 : vector<16x4xi1>
    %cst_112 = arith.constant 0.000000e+00 : f32
    %210 = vector.broadcast %cst_112 : f32 to vector<16x4xf32>
    %211 = arith.select %209, %200, %210 : vector<16x4xi1>, vector<16x4xf32>
    %c0_113 = arith.constant 0 : index
    %c56 = arith.constant 56 : index
    %212 = vector.load %arg8[%c0_113, %c56] : memref<16x100xf32, #tpu.memory_space<vmem>>, vector<16x4xf32>
    tpu.vector_store %arg8[%c0_113, %c56], %211 {strides = array<i32>} : memref<16x100xf32, #tpu.memory_space<vmem>>, vector<16x4xf32>,
    %c12_114 = arith.constant 12 : index
    %c0_115 = arith.constant 0 : index
    %213 = vector.load %arg7[%c12_114, %c0_115] : memref<36x4xf32, #tpu.memory_space<vmem>>, vector<16x4xf32>
    %c-2_i32_116 = arith.constant -2 : i32
    %214 = vector.broadcast %c-2_i32_116 : i32 to vector<16x4xi32>
    %215 = arith.addi %50, %214 : vector<16x4xi32>
    %c0_i32_117 = arith.constant 0 : i32
    %216 = vector.broadcast %c0_i32_117 : i32 to vector<16x4xi32>
    %217 = arith.cmpi sge, %215, %216 : vector<16x4xi32>
    %c-2_i32_118 = arith.constant -2 : i32
    %218 = vector.broadcast %c-2_i32_118 : i32 to vector<16x4xi32>
    %219 = arith.addi %50, %218 : vector<16x4xi32>
    %c4_i32_119 = arith.constant 4 : i32
    %220 = vector.broadcast %c4_i32_119 : i32 to vector<16x4xi32>
    %221 = arith.cmpi slt, %219, %220 : vector<16x4xi32>
    %222 = arith.andi %217, %221 : vector<16x4xi1>
    %cst_120 = arith.constant 0.000000e+00 : f32
    %223 = vector.broadcast %cst_120 : f32 to vector<16x4xf32>
    %224 = arith.select %222, %213, %223 : vector<16x4xi1>, vector<16x4xf32>
    %c0_121 = arith.constant 0 : index
    %c60 = arith.constant 60 : index
    %225 = vector.load %arg8[%c0_121, %c60] : memref<16x100xf32, #tpu.memory_space<vmem>>, vector<16x4xf32>
    tpu.vector_store %arg8[%c0_121, %c60], %224 {strides = array<i32>} : memref<16x100xf32, #tpu.memory_space<vmem>>, vector<16x4xf32>,
    %c13 = arith.constant 13 : index
    %c0_122 = arith.constant 0 : index
    %226 = vector.load %arg7[%c13, %c0_122] : memref<36x4xf32, #tpu.memory_space<vmem>>, vector<16x4xf32>
    %c-1_i32_123 = arith.constant -1 : i32
    %227 = vector.broadcast %c-1_i32_123 : i32 to vector<16x4xi32>
    %228 = arith.addi %50, %227 : vector<16x4xi32>
    %c0_i32_124 = arith.constant 0 : i32
    %229 = vector.broadcast %c0_i32_124 : i32 to vector<16x4xi32>
    %230 = arith.cmpi sge, %228, %229 : vector<16x4xi32>
    %c-1_i32_125 = arith.constant -1 : i32
    %231 = vector.broadcast %c-1_i32_125 : i32 to vector<16x4xi32>
    %232 = arith.addi %50, %231 : vector<16x4xi32>
    %c4_i32_126 = arith.constant 4 : i32
    %233 = vector.broadcast %c4_i32_126 : i32 to vector<16x4xi32>
    %234 = arith.cmpi slt, %232, %233 : vector<16x4xi32>
    %235 = arith.andi %230, %234 : vector<16x4xi1>
    %cst_127 = arith.constant 0.000000e+00 : f32
    %236 = vector.broadcast %cst_127 : f32 to vector<16x4xf32>
    %237 = arith.select %235, %226, %236 : vector<16x4xi1>, vector<16x4xf32>
    %c0_128 = arith.constant 0 : index
    %c64 = arith.constant 64 : index
    %238 = vector.load %arg8[%c0_128, %c64] : memref<16x100xf32, #tpu.memory_space<vmem>>, vector<16x4xf32>
    tpu.vector_store %arg8[%c0_128, %c64], %237 {strides = array<i32>} : memref<16x100xf32, #tpu.memory_space<vmem>>, vector<16x4xf32>,
    %c14 = arith.constant 14 : index
    %c0_129 = arith.constant 0 : index
    %239 = vector.load %arg7[%c14, %c0_129] : memref<36x4xf32, #tpu.memory_space<vmem>>, vector<16x4xf32>
    %c0_130 = arith.constant 0 : index
    %c68 = arith.constant 68 : index
    %240 = vector.load %arg8[%c0_130, %c68] : memref<16x100xf32, #tpu.memory_space<vmem>>, vector<16x4xf32>
    tpu.vector_store %arg8[%c0_130, %c68], %239 {strides = array<i32>} : memref<16x100xf32, #tpu.memory_space<vmem>>, vector<16x4xf32>,
    %c15 = arith.constant 15 : index
    %c0_131 = arith.constant 0 : index
    %241 = vector.load %arg7[%c15, %c0_131] : memref<36x4xf32, #tpu.memory_space<vmem>>, vector<16x4xf32>
    %c1_i32_132 = arith.constant 1 : i32
    %242 = vector.broadcast %c1_i32_132 : i32 to vector<16x4xi32>
    %243 = arith.addi %50, %242 : vector<16x4xi32>
    %c0_i32_133 = arith.constant 0 : i32
    %244 = vector.broadcast %c0_i32_133 : i32 to vector<16x4xi32>
    %245 = arith.cmpi sge, %243, %244 : vector<16x4xi32>
    %c1_i32_134 = arith.constant 1 : i32
    %246 = vector.broadcast %c1_i32_134 : i32 to vector<16x4xi32>
    %247 = arith.addi %50, %246 : vector<16x4xi32>
    %c4_i32_135 = arith.constant 4 : i32
    %248 = vector.broadcast %c4_i32_135 : i32 to vector<16x4xi32>
    %249 = arith.cmpi slt, %247, %248 : vector<16x4xi32>
    %250 = arith.andi %245, %249 : vector<16x4xi1>
    %cst_136 = arith.constant 0.000000e+00 : f32
    %251 = vector.broadcast %cst_136 : f32 to vector<16x4xf32>
    %252 = arith.select %250, %241, %251 : vector<16x4xi1>, vector<16x4xf32>
    %c0_137 = arith.constant 0 : index
    %c72 = arith.constant 72 : index
    %253 = vector.load %arg8[%c0_137, %c72] : memref<16x100xf32, #tpu.memory_space<vmem>>, vector<16x4xf32>
    tpu.vector_store %arg8[%c0_137, %c72], %252 {strides = array<i32>} : memref<16x100xf32, #tpu.memory_space<vmem>>, vector<16x4xf32>,
    %c16_138 = arith.constant 16 : index
    %c0_139 = arith.constant 0 : index
    %254 = vector.load %arg7[%c16_138, %c0_139] : memref<36x4xf32, #tpu.memory_space<vmem>>, vector<16x4xf32>
    %c2_i32_140 = arith.constant 2 : i32
    %255 = vector.broadcast %c2_i32_140 : i32 to vector<16x4xi32>
    %256 = arith.addi %50, %255 : vector<16x4xi32>
    %c0_i32_141 = arith.constant 0 : i32
    %257 = vector.broadcast %c0_i32_141 : i32 to vector<16x4xi32>
    %258 = arith.cmpi sge, %256, %257 : vector<16x4xi32>
    %c2_i32_142 = arith.constant 2 : i32
    %259 = vector.broadcast %c2_i32_142 : i32 to vector<16x4xi32>
    %260 = arith.addi %50, %259 : vector<16x4xi32>
    %c4_i32_143 = arith.constant 4 : i32
    %261 = vector.broadcast %c4_i32_143 : i32 to vector<16x4xi32>
    %262 = arith.cmpi slt, %260, %261 : vector<16x4xi32>
    %263 = arith.andi %258, %262 : vector<16x4xi1>
    %cst_144 = arith.constant 0.000000e+00 : f32
    %264 = vector.broadcast %cst_144 : f32 to vector<16x4xf32>
    %265 = arith.select %263, %254, %264 : vector<16x4xi1>, vector<16x4xf32>
    %c0_145 = arith.constant 0 : index
    %c76 = arith.constant 76 : index
    %266 = vector.load %arg8[%c0_145, %c76] : memref<16x100xf32, #tpu.memory_space<vmem>>, vector<16x4xf32>
    tpu.vector_store %arg8[%c0_145, %c76], %265 {strides = array<i32>} : memref<16x100xf32, #tpu.memory_space<vmem>>, vector<16x4xf32>,
    %c16_146 = arith.constant 16 : index
    %c0_147 = arith.constant 0 : index
    %267 = vector.load %arg7[%c16_146, %c0_147] : memref<36x4xf32, #tpu.memory_space<vmem>>, vector<16x4xf32>
    %c-2_i32_148 = arith.constant -2 : i32
    %268 = vector.broadcast %c-2_i32_148 : i32 to vector<16x4xi32>
    %269 = arith.addi %50, %268 : vector<16x4xi32>
    %c0_i32_149 = arith.constant 0 : i32
    %270 = vector.broadcast %c0_i32_149 : i32 to vector<16x4xi32>
    %271 = arith.cmpi sge, %269, %270 : vector<16x4xi32>
    %c-2_i32_150 = arith.constant -2 : i32
    %272 = vector.broadcast %c-2_i32_150 : i32 to vector<16x4xi32>
    %273 = arith.addi %50, %272 : vector<16x4xi32>
    %c4_i32_151 = arith.constant 4 : i32
    %274 = vector.broadcast %c4_i32_151 : i32 to vector<16x4xi32>
    %275 = arith.cmpi slt, %273, %274 : vector<16x4xi32>
    %276 = arith.andi %271, %275 : vector<16x4xi1>
    %cst_152 = arith.constant 0.000000e+00 : f32
    %277 = vector.broadcast %cst_152 : f32 to vector<16x4xf32>
    %278 = arith.select %276, %267, %277 : vector<16x4xi1>, vector<16x4xf32>
    %c0_153 = arith.constant 0 : index
    %c80 = arith.constant 80 : index
    %279 = vector.load %arg8[%c0_153, %c80] : memref<16x100xf32, #tpu.memory_space<vmem>>, vector<16x4xf32>
    tpu.vector_store %arg8[%c0_153, %c80], %278 {strides = array<i32>} : memref<16x100xf32, #tpu.memory_space<vmem>>, vector<16x4xf32>,
    %c17 = arith.constant 17 : index
    %c0_154 = arith.constant 0 : index
    %280 = vector.load %arg7[%c17, %c0_154] : memref<36x4xf32, #tpu.memory_space<vmem>>, vector<16x4xf32>
    %c-1_i32_155 = arith.constant -1 : i32
    %281 = vector.broadcast %c-1_i32_155 : i32 to vector<16x4xi32>
    %282 = arith.addi %50, %281 : vector<16x4xi32>
    %c0_i32_156 = arith.constant 0 : i32
    %283 = vector.broadcast %c0_i32_156 : i32 to vector<16x4xi32>
    %284 = arith.cmpi sge, %282, %283 : vector<16x4xi32>
    %c-1_i32_157 = arith.constant -1 : i32
    %285 = vector.broadcast %c-1_i32_157 : i32 to vector<16x4xi32>
    %286 = arith.addi %50, %285 : vector<16x4xi32>
    %c4_i32_158 = arith.constant 4 : i32
    %287 = vector.broadcast %c4_i32_158 : i32 to vector<16x4xi32>
    %288 = arith.cmpi slt, %286, %287 : vector<16x4xi32>
    %289 = arith.andi %284, %288 : vector<16x4xi1>
    %cst_159 = arith.constant 0.000000e+00 : f32
    %290 = vector.broadcast %cst_159 : f32 to vector<16x4xf32>
    %291 = arith.select %289, %280, %290 : vector<16x4xi1>, vector<16x4xf32>
    %c0_160 = arith.constant 0 : index
    %c84 = arith.constant 84 : index
    %292 = vector.load %arg8[%c0_160, %c84] : memref<16x100xf32, #tpu.memory_space<vmem>>, vector<16x4xf32>
    tpu.vector_store %arg8[%c0_160, %c84], %291 {strides = array<i32>} : memref<16x100xf32, #tpu.memory_space<vmem>>, vector<16x4xf32>,
    %c18 = arith.constant 18 : index
    %c0_161 = arith.constant 0 : index
    %293 = vector.load %arg7[%c18, %c0_161] : memref<36x4xf32, #tpu.memory_space<vmem>>, vector<16x4xf32>
    %c0_162 = arith.constant 0 : index
    %c88 = arith.constant 88 : index
    %294 = vector.load %arg8[%c0_162, %c88] : memref<16x100xf32, #tpu.memory_space<vmem>>, vector<16x4xf32>
    tpu.vector_store %arg8[%c0_162, %c88], %293 {strides = array<i32>} : memref<16x100xf32, #tpu.memory_space<vmem>>, vector<16x4xf32>,
    %c19 = arith.constant 19 : index
    %c0_163 = arith.constant 0 : index
    %295 = vector.load %arg7[%c19, %c0_163] : memref<36x4xf32, #tpu.memory_space<vmem>>, vector<16x4xf32>
    %c1_i32_164 = arith.constant 1 : i32
    %296 = vector.broadcast %c1_i32_164 : i32 to vector<16x4xi32>
    %297 = arith.addi %50, %296 : vector<16x4xi32>
    %c0_i32_165 = arith.constant 0 : i32
    %298 = vector.broadcast %c0_i32_165 : i32 to vector<16x4xi32>
    %299 = arith.cmpi sge, %297, %298 : vector<16x4xi32>
    %c1_i32_166 = arith.constant 1 : i32
    %300 = vector.broadcast %c1_i32_166 : i32 to vector<16x4xi32>
    %301 = arith.addi %50, %300 : vector<16x4xi32>
    %c4_i32_167 = arith.constant 4 : i32
    %302 = vector.broadcast %c4_i32_167 : i32 to vector<16x4xi32>
    %303 = arith.cmpi slt, %301, %302 : vector<16x4xi32>
    %304 = arith.andi %299, %303 : vector<16x4xi1>
    %cst_168 = arith.constant 0.000000e+00 : f32
    %305 = vector.broadcast %cst_168 : f32 to vector<16x4xf32>
    %306 = arith.select %304, %295, %305 : vector<16x4xi1>, vector<16x4xf32>
    %c0_169 = arith.constant 0 : index
    %c92 = arith.constant 92 : index
    %307 = vector.load %arg8[%c0_169, %c92] : memref<16x100xf32, #tpu.memory_space<vmem>>, vector<16x4xf32>
    tpu.vector_store %arg8[%c0_169, %c92], %306 {strides = array<i32>} : memref<16x100xf32, #tpu.memory_space<vmem>>, vector<16x4xf32>,
    %c20_170 = arith.constant 20 : index
    %c0_171 = arith.constant 0 : index
    %308 = vector.load %arg7[%c20_170, %c0_171] : memref<36x4xf32, #tpu.memory_space<vmem>>, vector<16x4xf32>
    %c2_i32_172 = arith.constant 2 : i32
    %309 = vector.broadcast %c2_i32_172 : i32 to vector<16x4xi32>
    %310 = arith.addi %50, %309 : vector<16x4xi32>
    %c0_i32_173 = arith.constant 0 : i32
    %311 = vector.broadcast %c0_i32_173 : i32 to vector<16x4xi32>
    %312 = arith.cmpi sge, %310, %311 : vector<16x4xi32>
    %c2_i32_174 = arith.constant 2 : i32
    %313 = vector.broadcast %c2_i32_174 : i32 to vector<16x4xi32>
    %314 = arith.addi %50, %313 : vector<16x4xi32>
    %c4_i32_175 = arith.constant 4 : i32
    %315 = vector.broadcast %c4_i32_175 : i32 to vector<16x4xi32>
    %316 = arith.cmpi slt, %314, %315 : vector<16x4xi32>
    %317 = arith.andi %312, %316 : vector<16x4xi1>
    %cst_176 = arith.constant 0.000000e+00 : f32
    %318 = vector.broadcast %cst_176 : f32 to vector<16x4xf32>
    %319 = arith.select %317, %308, %318 : vector<16x4xi1>, vector<16x4xf32>
    %c0_177 = arith.constant 0 : index
    %c96 = arith.constant 96 : index
    %320 = vector.load %arg8[%c0_177, %c96] : memref<16x100xf32, #tpu.memory_space<vmem>>, vector<16x4xf32>
    tpu.vector_store %arg8[%c0_177, %c96], %319 {strides = array<i32>} : memref<16x100xf32, #tpu.memory_space<vmem>>, vector<16x4xf32>,
    %c0_178 = arith.constant 0 : index
    %c0_179 = arith.constant 0 : index
    %321 = vector.load %arg8[%c0_178, %c0_179] : memref<16x100xf32, #tpu.memory_space<vmem>>, vector<16x100xf32>
    %cst_180 = arith.constant dense<0.000000e+00> : vector<4x100xf32>
    %322 = tpu.matmul %30, %321, %cst_180 {dimension_numbers = #tpu.dot_dimension_numbers<[1], [0], [0], [1], [0, 0, 1, 1], [], []>} : vector<4x16xf32>, vector<16x100xf32>, vector<4x100xf32> -> vector<4x100xf32>
    %323 = vector.extract_strided_slice %322 {offsets = [0, 0], sizes = [4, 12], strides = [1, 1]} : vector<4x100xf32> to vector<4x12xf32>
    %c0_181 = arith.constant 0 : index
    %c0_182 = arith.constant 0 : index
    %324 = vector.load %arg9[%c0_181, %c0_182] : memref<36x36xf32, #tpu.memory_space<vmem>>, vector<4x12xf32>
    tpu.vector_store %arg9[%c0_181, %c0_182], %323 {strides = array<i32>} : memref<36x36xf32, #tpu.memory_space<vmem>>, vector<4x12xf32>,
    %325 = vector.extract_strided_slice %322 {offsets = [0, 20], sizes = [4, 12], strides = [1, 1]} : vector<4x100xf32> to vector<4x12xf32>
    %c0_183 = arith.constant 0 : index
    %c12_184 = arith.constant 12 : index
    %326 = vector.load %arg9[%c0_183, %c12_184] : memref<36x36xf32, #tpu.memory_space<vmem>>, vector<4x12xf32>
    tpu.vector_store %arg9[%c0_183, %c12_184], %325 {strides = array<i32>} : memref<36x36xf32, #tpu.memory_space<vmem>>, vector<4x12xf32>,
    %327 = vector.extract_strided_slice %322 {offsets = [0, 40], sizes = [4, 12], strides = [1, 1]} : vector<4x100xf32> to vector<4x12xf32>
    %c0_185 = arith.constant 0 : index
    %c24_186 = arith.constant 24 : index
    %328 = vector.load %arg9[%c0_185, %c24_186] : memref<36x36xf32, #tpu.memory_space<vmem>>, vector<4x12xf32>
    tpu.vector_store %arg9[%c0_185, %c24_186], %327 {strides = array<i32>} : memref<36x36xf32, #tpu.memory_space<vmem>>, vector<4x12xf32>,
    %329 = vector.extract_strided_slice %322 {offsets = [0, 4], sizes = [4, 12], strides = [1, 1]} : vector<4x100xf32> to vector<4x12xf32>
    %c4_187 = arith.constant 4 : index
    %c0_188 = arith.constant 0 : index
    %330 = vector.load %arg9[%c4_187, %c0_188] : memref<36x36xf32, #tpu.memory_space<vmem>>, vector<4x12xf32>
    tpu.vector_store %arg9[%c4_187, %c0_188], %329 {strides = array<i32>} : memref<36x36xf32, #tpu.memory_space<vmem>>, vector<4x12xf32>,
    %331 = vector.extract_strided_slice %322 {offsets = [0, 24], sizes = [4, 12], strides = [1, 1]} : vector<4x100xf32> to vector<4x12xf32>
    %c4_189 = arith.constant 4 : index
    %c12_190 = arith.constant 12 : index
    %332 = vector.load %arg9[%c4_189, %c12_190] : memref<36x36xf32, #tpu.memory_space<vmem>>, vector<4x12xf32>
    tpu.vector_store %arg9[%c4_189, %c12_190], %331 {strides = array<i32>} : memref<36x36xf32, #tpu.memory_space<vmem>>, vector<4x12xf32>,
    %333 = vector.extract_strided_slice %322 {offsets = [0, 44], sizes = [4, 12], strides = [1, 1]} : vector<4x100xf32> to vector<4x12xf32>
    %c4_191 = arith.constant 4 : index
    %c24_192 = arith.constant 24 : index
    %334 = vector.load %arg9[%c4_191, %c24_192] : memref<36x36xf32, #tpu.memory_space<vmem>>, vector<4x12xf32>
    tpu.vector_store %arg9[%c4_191, %c24_192], %333 {strides = array<i32>} : memref<36x36xf32, #tpu.memory_space<vmem>>, vector<4x12xf32>,
    %335 = vector.extract_strided_slice %322 {offsets = [0, 8], sizes = [4, 12], strides = [1, 1]} : vector<4x100xf32> to vector<4x12xf32>
    %c8_193 = arith.constant 8 : index
    %c0_194 = arith.constant 0 : index
    %336 = vector.load %arg9[%c8_193, %c0_194] : memref<36x36xf32, #tpu.memory_space<vmem>>, vector<4x12xf32>
    tpu.vector_store %arg9[%c8_193, %c0_194], %335 {strides = array<i32>} : memref<36x36xf32, #tpu.memory_space<vmem>>, vector<4x12xf32>,
    %337 = vector.extract_strided_slice %322 {offsets = [0, 28], sizes = [4, 12], strides = [1, 1]} : vector<4x100xf32> to vector<4x12xf32>
    %c8_195 = arith.constant 8 : index
    %c12_196 = arith.constant 12 : index
    %338 = vector.load %arg9[%c8_195, %c12_196] : memref<36x36xf32, #tpu.memory_space<vmem>>, vector<4x12xf32>
    tpu.vector_store %arg9[%c8_195, %c12_196], %337 {strides = array<i32>} : memref<36x36xf32, #tpu.memory_space<vmem>>, vector<4x12xf32>,
    %339 = vector.extract_strided_slice %322 {offsets = [0, 48], sizes = [4, 12], strides = [1, 1]} : vector<4x100xf32> to vector<4x12xf32>
    %c8_197 = arith.constant 8 : index
    %c24_198 = arith.constant 24 : index
    %340 = vector.load %arg9[%c8_197, %c24_198] : memref<36x36xf32, #tpu.memory_space<vmem>>, vector<4x12xf32>
    tpu.vector_store %arg9[%c8_197, %c24_198], %339 {strides = array<i32>} : memref<36x36xf32, #tpu.memory_space<vmem>>, vector<4x12xf32>,
    %341 = vector.extract_strided_slice %322 {offsets = [0, 20], sizes = [4, 12], strides = [1, 1]} : vector<4x100xf32> to vector<4x12xf32>
    %c12_199 = arith.constant 12 : index
    %c0_200 = arith.constant 0 : index
    %342 = vector.load %arg9[%c12_199, %c0_200] : memref<36x36xf32, #tpu.memory_space<vmem>>, vector<4x12xf32>
    tpu.vector_store %arg9[%c12_199, %c0_200], %341 {strides = array<i32>} : memref<36x36xf32, #tpu.memory_space<vmem>>, vector<4x12xf32>,
    %343 = vector.extract_strided_slice %322 {offsets = [0, 40], sizes = [4, 12], strides = [1, 1]} : vector<4x100xf32> to vector<4x12xf32>
    %c12_201 = arith.constant 12 : index
    %c12_202 = arith.constant 12 : index
    %344 = vector.load %arg9[%c12_201, %c12_202] : memref<36x36xf32, #tpu.memory_space<vmem>>, vector<4x12xf32>
    tpu.vector_store %arg9[%c12_201, %c12_202], %343 {strides = array<i32>} : memref<36x36xf32, #tpu.memory_space<vmem>>, vector<4x12xf32>,
    %345 = vector.extract_strided_slice %322 {offsets = [0, 60], sizes = [4, 12], strides = [1, 1]} : vector<4x100xf32> to vector<4x12xf32>
    %c12_203 = arith.constant 12 : index
    %c24_204 = arith.constant 24 : index
    %346 = vector.load %arg9[%c12_203, %c24_204] : memref<36x36xf32, #tpu.memory_space<vmem>>, vector<4x12xf32>
    tpu.vector_store %arg9[%c12_203, %c24_204], %345 {strides = array<i32>} : memref<36x36xf32, #tpu.memory_space<vmem>>, vector<4x12xf32>,
    %347 = vector.extract_strided_slice %322 {offsets = [0, 24], sizes = [4, 12], strides = [1, 1]} : vector<4x100xf32> to vector<4x12xf32>
    %c16_205 = arith.constant 16 : index
    %c0_206 = arith.constant 0 : index
    %348 = vector.load %arg9[%c16_205, %c0_206] : memref<36x36xf32, #tpu.memory_space<vmem>>, vector<4x12xf32>
    tpu.vector_store %arg9[%c16_205, %c0_206], %347 {strides = array<i32>} : memref<36x36xf32, #tpu.memory_space<vmem>>, vector<4x12xf32>,
    %349 = vector.extract_strided_slice %322 {offsets = [0, 44], sizes = [4, 12], strides = [1, 1]} : vector<4x100xf32> to vector<4x12xf32>
    %c16_207 = arith.constant 16 : index
    %c12_208 = arith.constant 12 : index
    %350 = vector.load %arg9[%c16_207, %c12_208] : memref<36x36xf32, #tpu.memory_space<vmem>>, vector<4x12xf32>
    tpu.vector_store %arg9[%c16_207, %c12_208], %349 {strides = array<i32>} : memref<36x36xf32, #tpu.memory_space<vmem>>, vector<4x12xf32>,
    %351 = vector.extract_strided_slice %322 {offsets = [0, 64], sizes = [4, 12], strides = [1, 1]} : vector<4x100xf32> to vector<4x12xf32>
    %c16_209 = arith.constant 16 : index
    %c24_210 = arith.constant 24 : index
    %352 = vector.load %arg9[%c16_209, %c24_210] : memref<36x36xf32, #tpu.memory_space<vmem>>, vector<4x12xf32>
    tpu.vector_store %arg9[%c16_209, %c24_210], %351 {strides = array<i32>} : memref<36x36xf32, #tpu.memory_space<vmem>>, vector<4x12xf32>,
    %353 = vector.extract_strided_slice %322 {offsets = [0, 28], sizes = [4, 12], strides = [1, 1]} : vector<4x100xf32> to vector<4x12xf32>
    %c20_211 = arith.constant 20 : index
    %c0_212 = arith.constant 0 : index
    %354 = vector.load %arg9[%c20_211, %c0_212] : memref<36x36xf32, #tpu.memory_space<vmem>>, vector<4x12xf32>
    tpu.vector_store %arg9[%c20_211, %c0_212], %353 {strides = array<i32>} : memref<36x36xf32, #tpu.memory_space<vmem>>, vector<4x12xf32>,
    %355 = vector.extract_strided_slice %322 {offsets = [0, 48], sizes = [4, 12], strides = [1, 1]} : vector<4x100xf32> to vector<4x12xf32>
    %c20_213 = arith.constant 20 : index
    %c12_214 = arith.constant 12 : index
    %356 = vector.load %arg9[%c20_213, %c12_214] : memref<36x36xf32, #tpu.memory_space<vmem>>, vector<4x12xf32>
    tpu.vector_store %arg9[%c20_213, %c12_214], %355 {strides = array<i32>} : memref<36x36xf32, #tpu.memory_space<vmem>>, vector<4x12xf32>,
    %357 = vector.extract_strided_slice %322 {offsets = [0, 68], sizes = [4, 12], strides = [1, 1]} : vector<4x100xf32> to vector<4x12xf32>
    %c20_215 = arith.constant 20 : index
    %c24_216 = arith.constant 24 : index
    %358 = vector.load %arg9[%c20_215, %c24_216] : memref<36x36xf32, #tpu.memory_space<vmem>>, vector<4x12xf32>
    tpu.vector_store %arg9[%c20_215, %c24_216], %357 {strides = array<i32>} : memref<36x36xf32, #tpu.memory_space<vmem>>, vector<4x12xf32>,
    %359 = vector.extract_strided_slice %322 {offsets = [0, 40], sizes = [4, 12], strides = [1, 1]} : vector<4x100xf32> to vector<4x12xf32>
    %c24_217 = arith.constant 24 : index
    %c0_218 = arith.constant 0 : index
    %360 = vector.load %arg9[%c24_217, %c0_218] : memref<36x36xf32, #tpu.memory_space<vmem>>, vector<4x12xf32>
    tpu.vector_store %arg9[%c24_217, %c0_218], %359 {strides = array<i32>} : memref<36x36xf32, #tpu.memory_space<vmem>>, vector<4x12xf32>,
    %361 = vector.extract_strided_slice %322 {offsets = [0, 60], sizes = [4, 12], strides = [1, 1]} : vector<4x100xf32> to vector<4x12xf32>
    %c24_219 = arith.constant 24 : index
    %c12_220 = arith.constant 12 : index
    %362 = vector.load %arg9[%c24_219, %c12_220] : memref<36x36xf32, #tpu.memory_space<vmem>>, vector<4x12xf32>
    tpu.vector_store %arg9[%c24_219, %c12_220], %361 {strides = array<i32>} : memref<36x36xf32, #tpu.memory_space<vmem>>, vector<4x12xf32>,
    %363 = vector.extract_strided_slice %322 {offsets = [0, 80], sizes = [4, 12], strides = [1, 1]} : vector<4x100xf32> to vector<4x12xf32>
    %c24_221 = arith.constant 24 : index
    %c24_222 = arith.constant 24 : index
    %364 = vector.load %arg9[%c24_221, %c24_222] : memref<36x36xf32, #tpu.memory_space<vmem>>, vector<4x12xf32>
    tpu.vector_store %arg9[%c24_221, %c24_222], %363 {strides = array<i32>} : memref<36x36xf32, #tpu.memory_space<vmem>>, vector<4x12xf32>,
    %365 = vector.extract_strided_slice %322 {offsets = [0, 44], sizes = [4, 12], strides = [1, 1]} : vector<4x100xf32> to vector<4x12xf32>
    %c28_223 = arith.constant 28 : index
    %c0_224 = arith.constant 0 : index
    %366 = vector.load %arg9[%c28_223, %c0_224] : memref<36x36xf32, #tpu.memory_space<vmem>>, vector<4x12xf32>
    tpu.vector_store %arg9[%c28_223, %c0_224], %365 {strides = array<i32>} : memref<36x36xf32, #tpu.memory_space<vmem>>, vector<4x12xf32>,
    %367 = vector.extract_strided_slice %322 {offsets = [0, 64], sizes = [4, 12], strides = [1, 1]} : vector<4x100xf32> to vector<4x12xf32>
    %c28_225 = arith.constant 28 : index
    %c12_226 = arith.constant 12 : index
    %368 = vector.load %arg9[%c28_225, %c12_226] : memref<36x36xf32, #tpu.memory_space<vmem>>, vector<4x12xf32>
    tpu.vector_store %arg9[%c28_225, %c12_226], %367 {strides = array<i32>} : memref<36x36xf32, #tpu.memory_space<vmem>>, vector<4x12xf32>,
    %369 = vector.extract_strided_slice %322 {offsets = [0, 84], sizes = [4, 12], strides = [1, 1]} : vector<4x100xf32> to vector<4x12xf32>
    %c28_227 = arith.constant 28 : index
    %c24_228 = arith.constant 24 : index
    %370 = vector.load %arg9[%c28_227, %c24_228] : memref<36x36xf32, #tpu.memory_space<vmem>>, vector<4x12xf32>
    tpu.vector_store %arg9[%c28_227, %c24_228], %369 {strides = array<i32>} : memref<36x36xf32, #tpu.memory_space<vmem>>, vector<4x12xf32>,
    %371 = vector.extract_strided_slice %322 {offsets = [0, 48], sizes = [4, 12], strides = [1, 1]} : vector<4x100xf32> to vector<4x12xf32>
    %c32_229 = arith.constant 32 : index
    %c0_230 = arith.constant 0 : index
    %372 = vector.load %arg9[%c32_229, %c0_230] : memref<36x36xf32, #tpu.memory_space<vmem>>, vector<4x12xf32>
    tpu.vector_store %arg9[%c32_229, %c0_230], %371 {strides = array<i32>} : memref<36x36xf32, #tpu.memory_space<vmem>>, vector<4x12xf32>,
    %373 = vector.extract_strided_slice %322 {offsets = [0, 68], sizes = [4, 12], strides = [1, 1]} : vector<4x100xf32> to vector<4x12xf32>
    %c32_231 = arith.constant 32 : index
    %c12_232 = arith.constant 12 : index
    %374 = vector.load %arg9[%c32_231, %c12_232] : memref<36x36xf32, #tpu.memory_space<vmem>>, vector<4x12xf32>
    tpu.vector_store %arg9[%c32_231, %c12_232], %373 {strides = array<i32>} : memref<36x36xf32, #tpu.memory_space<vmem>>, vector<4x12xf32>,
    %375 = vector.extract_strided_slice %322 {offsets = [0, 88], sizes = [4, 12], strides = [1, 1]} : vector<4x100xf32> to vector<4x12xf32>
    %c32_233 = arith.constant 32 : index
    %c24_234 = arith.constant 24 : index
    %376 = vector.load %arg9[%c32_233, %c24_234] : memref<36x36xf32, #tpu.memory_space<vmem>>, vector<4x12xf32>
    tpu.vector_store %arg9[%c32_233, %c24_234], %375 {strides = array<i32>} : memref<36x36xf32, #tpu.memory_space<vmem>>, vector<4x12xf32>,
    %c0_235 = arith.constant 0 : index
    %c0_236 = arith.constant 0 : index
    %377 = vector.load %arg9[%c0_235, %c0_236] : memref<36x36xf32, #tpu.memory_space<vmem>>, vector<36x36xf32>
    %c0_237 = arith.constant 0 : index
    %c0_238 = arith.constant 0 : index
    %378 = vector.load %arg4[%c0_237, %c0_238] : memref<36x4xf32, #tpu.memory_space<vmem>>, vector<36x4xf32>
    %cst_239 = arith.constant dense<0.000000e+00> : vector<36x4xf32>
    %379 = tpu.matmul %377, %378, %cst_239 {dimension_numbers = #tpu.dot_dimension_numbers<[1], [0], [0], [1], [0, 0, 1, 1], [], []>} : vector<36x36xf32>, vector<36x4xf32>, vector<36x4xf32> -> vector<36x4xf32>
    %380 = arith.mulf %379, %379 : vector<36x4xf32>
    %cst_240 = arith.constant dense<0.000000e+00> : vector<4xf32>
    %381 = vector.multi_reduction <add>, %380, %cst_240 [0] : vector<36x4xf32> to vector<4xf32>
    %382 = vector.shape_cast %381 : vector<4xf32> to vector<1x4xf32>
    %383 = math.sqrt %382 : vector<1x4xf32>
    %c0_241 = arith.constant 0 : index
    %384 = memref.load %arg5[%c0_241] : memref<1xf32, #tpu.memory_space<smem>>
    %cst_242 = arith.constant 9.99999996E-13 : f32
    %385 = vector.broadcast %cst_242 : f32 to vector<1x4xf32>
    %386 = arith.maximumf %383, %385 : vector<1x4xf32>
    %387 = vector.broadcast %384 : f32 to vector<1x4xf32>
    %388 = arith.divf %387, %386 : vector<1x4xf32>
    %c0_243 = arith.constant 0 : index
    %c0_244 = arith.constant 0 : index
    %389 = vector.load %arg4[%c0_243, %c0_244] : memref<36x4xf32, #tpu.memory_space<vmem>>, vector<36x4xf32>
    %390 = vector.broadcast %388 : vector<1x4xf32> to vector<36x4xf32>
    %391 = arith.mulf %379, %390 : vector<36x4xf32>
    %392 = arith.addf %389, %391 : vector<36x4xf32>
    %393 = tpu.transpose %392, [1, 0] : vector<36x4xf32> -> vector<4x36xf32>
    %c0_245 = arith.constant 0 : index
    %c0_246 = arith.constant 0 : index
    %c0_247 = arith.constant 0 : index
    %394 = vector.load %arg2[%c0_245, %c0_246, %c0_247] : memref<1x36x144xf32, #tpu.memory_space<vmem>>, vector<1x36x144xf32>
    %395 = vector.shape_cast %394 : vector<1x36x144xf32> to vector<36x144xf32>
    %cst_248 = arith.constant dense<0.000000e+00> : vector<4x144xf32>
    %396 = tpu.matmul %393, %395, %cst_248 {dimension_numbers = #tpu.dot_dimension_numbers<[1], [0], [0], [1], [0, 0, 1, 1], [], []>} : vector<4x36xf32>, vector<36x144xf32>, vector<4x144xf32> -> vector<4x144xf32>
    %cst_249 = arith.constant 0.000000e+00 : f32
    %397 = vector.broadcast %cst_249 : f32 to vector<4x144xf32>
    %398 = arith.maximumf %396, %397 : vector<4x144xf32>
    %c0_250 = arith.constant 0 : index
    %c0_251 = arith.constant 0 : index
    %c0_252 = arith.constant 0 : index
    %399 = vector.load %arg6[%c0_250, %c0_251, %c0_252] : memref<1x4x144xf32, #tpu.memory_space<vmem>>, vector<1x4x144xf32>
    %400 = vector.shape_cast %399 : vector<1x4x144xf32> to vector<4x144xf32>
    %401 = vector.shape_cast %398 : vector<4x144xf32> to vector<1x4x144xf32>
    tpu.vector_store %arg6[%c0_250, %c0_251, %c0_252], %401 {strides = array<i32>} : memref<1x4x144xf32, #tpu.memory_space<vmem>>, vector<1x4x144xf32>,
    return
  }
  func.func @transform_0(%arg0: i32) -> (i32, i32, i32) {
    %c0_i32 = arith.constant 0 : i32
    %c0_i32_0 = arith.constant 0 : i32
    %c0_i32_1 = arith.constant 0 : i32
    return %arg0, %c0_i32, %c0_i32_0 : i32, i32, i32
  }
  func.func @transform_1(%arg0: i32) -> (i32, i32, i32) {
    %c0_i32 = arith.constant 0 : i32
    %c0_i32_0 = arith.constant 0 : i32
    %c0_i32_1 = arith.constant 0 : i32
    return %arg0, %c0_i32, %c0_i32_0 : i32, i32, i32
  }
  func.func @transform_2(%arg0: i32) -> (i32, i32) {
    %c0_i32 = arith.constant 0 : i32
    %c0_i32_0 = arith.constant 0 : i32
    %c0_i32_1 = arith.constant 0 : i32
    return %c0_i32, %c0_i32_0 : i32, i32
  }
  func.func @transform_3(%arg0: i32) -> (i32, i32) {
    %c0_i32 = arith.constant 0 : i32
    %c0_i32_0 = arith.constant 0 : i32
    %c0_i32_1 = arith.constant 0 : i32
    return %c0_i32, %c0_i32_0 : i32, i32
  }
  func.func @transform_4(%arg0: i32) -> i32 {
    %c0_i32 = arith.constant 0 : i32
    %c0_i32_0 = arith.constant 0 : i32
    return %c0_i32 : i32
  }
  func.func @transform_5(%arg0: i32) -> (i32, i32, i32) {
    %c0_i32 = arith.constant 0 : i32
    %c0_i32_0 = arith.constant 0 : i32
    %c0_i32_1 = arith.constant 0 : i32
    return %arg0, %c0_i32, %c0_i32_0 : i32, i32, i32
  }
}

</mosaic_0001>

<llo_original>
// kernel: kam_forward.1
$region0: #{kam_forward.1}
  #allocation0 [shape = 'u32[]', space=smem, size = 0x4, offset = 0x4, fixed_abs, tag = 'smem constant byte address 0x4 - core index']
  #allocation1 [shape = 'u32[72,128]{1,0:T(1,128)}', space=vmem, size = 0x9000, scoped, tag = 'internal scratch']
  #allocation2 [shape = 'f32[36,4]{1,0:T(8,128)}', space=vmem, size = 0x5000, scoped, tag = 'scratch operand']
  #allocation3 [shape = 'f32[16,100]{1,0:T(8,128)}', space=vmem, size = 0x2000, scoped, tag = 'scratch operand']
  #allocation4 [shape = 'f32[36,36]{1,0:T(8,128)}', space=vmem, size = 0x5000, scoped, tag = 'scratch operand']
  #allocation5 [shape = 'f32[1]{0:T(128)S(6)}', space=smem, size = 0x200, scoped, tag = 'scoped memory for kam_forward.1']
  %s0 = inlined_call_operand.vmem [shape: f32[2,16,36], index: 0, kind: input, shape index: {}]
  %s1 = inlined_call_operand.vmem [shape: f32[2,36,144], index: 1, kind: input, shape index: {}]
  %s2 = inlined_call_operand.vmem [shape: f32[36,8], index: 2, kind: input, shape index: {}]
  %s3 = inlined_call_operand.vmem [shape: f32[36,4], index: 3, kind: input, shape index: {}]
  %s4 = inlined_call_operand.<no memory space> [shape: f32[1], index: 4, kind: input, shape index: {}]
  %s5 = inlined_call_operand.vmem [shape: f32[2,4,144], index: 5, kind: output, shape index: {}]
  %s6 = sld [smem:[#allocation0]]
  $region53: #{kam_forward.1} parent=0
    _
  %s8 = ssub.s32 1, %s6
  %s9 = scalar_select 0, %s8, %s6
  %10 = sst [smem:[#allocation5]] %s4
  loop: start=0, step=1, limit=4
  $region2: #{kam_forward.1} parent=0 // loop_pre_header
    _
  $region3: #{kam_forward.1} parent=0 // loop_header
    %s12 = sphi 0, %s16
    %p13 = scmp.ge.s32.totalorder %s12, 4
    %s22 = sphi 0, %s24
    %s25 = sphi 0, %s22
    %s26 = sphi 0, %s25
    %s42 = sphi 0, %s26
    %s48 = sphi 0, %s50
    %s51 = sphi 0, %s48
    %s52 = sphi 0, %s51
    %s68 = sphi 0, %s52
    %s72 = sphi 0, %s72
    %s74 = sphi 0, %s72
    %s75 = sphi 0, %s74
    %s89 = sphi 0, %s75
    %s93 = sphi 0, %s93
    %s95 = sphi 0, %s93
    %s96 = sphi 0, %s95
    %s110 = sphi 0, %s96
    %s114 = sphi 0, %s114
    %s116 = sphi 0, %s114
    %s117 = sphi 0, %s116
    %s131 = sphi 0, %s117
    %s137 = sphi 0, %s139
    %s140 = sphi 0, %s137
    %s141 = sphi 0, %s140
    %s157 = sphi 0, %s141
  $region4: #{kam_forward.1} parent=0 // loop_header_branch
    %15 = sbr.rel (%p13) target = $region8
  $region5: #{kam_forward.1} parent=0 // loop_body
    %s17 = ssub.s32 %s12, 1
    %s18 = ssub.s32 %s12, 2
    %s19 = sadd.s32 %s12, 1
    %s20 = ssub.s32 %s12, %s19
    %p21 = scmp.eq.s32.totalorder %s20, 0
    %s23 = sadd.s32 %s22, 1
    %s24 = scalar_select %p21, %s22, %s23
    %p27 = pneg %p21
    %p28 = scmp.eq.s32.totalorder %s12, 1
    %p29 = por %p27, %p28
    %p30 = scmp.ne.s32.totalorder %s22, %s25
    %p31 = scmp.eq.s32.totalorder %s12, 0
    %p32 = por %p30, %p31
    %p33 = scmp.ne.s32.totalorder %s22, %s25
    %p34 = scmp.eq.s32.totalorder %s17, 1
    %p35 = por %p33, %p34
    %p36 = scmp.ne.s32.totalorder %s25, %s26
    %p37 = scmp.eq.s32.totalorder %s17, 0
    %p38 = por %p36, %p37
    %p39 = scmp.ne.s32.totalorder %s25, %s26
    %p40 = scmp.eq.s32.totalorder %s18, 1
    %p41 = por %p39, %p40
    %p43 = scmp.ne.s32.totalorder %s26, %s42
    %p44 = scmp.eq.s32.totalorder %s18, 0
    %p45 = por %p43, %p44
    %s46 = ssub.s32 %s12, %s19
    %p47 = scmp.eq.s32.totalorder %s46, 0
    %s49 = sadd.s32 %s48, 1
    %s50 = scalar_select %p47, %s48, %s49
    %p53 = pneg %p47
    %p54 = scmp.eq.s32.totalorder %s12, 1
    %p55 = por %p53, %p54
    %p56 = scmp.ne.s32.totalorder %s48, %s51
    %p57 = scmp.eq.s32.totalorder %s12, 0
    %p58 = por %p56, %p57
    %p59 = scmp.ne.s32.totalorder %s48, %s51
    %p60 = scmp.eq.s32.totalorder %s17, 1
    %p61 = por %p59, %p60
    %p62 = scmp.ne.s32.totalorder %s51, %s52
    %p63 = scmp.eq.s32.totalorder %s17, 0
    %p64 = por %p62, %p63
    %p65 = scmp.ne.s32.totalorder %s51, %s52
    %p66 = scmp.eq.s32.totalorder %s18, 1
    %p67 = por %p65, %p66
    %p69 = scmp.ne.s32.totalorder %s52, %s68
    %p70 = scmp.eq.s32.totalorder %s18, 0
    %p71 = por %p69, %p70
    %s73 = sadd.s32 %s72, 1
    %p76 = scmp.eq.s32.totalorder %s12, 1
    %p77 = scmp.ne.s32.totalorder %s72, %s74
    %p78 = scmp.eq.s32.totalorder %s12, 0
    %p79 = por %p77, %p78
    %p80 = scmp.ne.s32.totalorder %s72, %s74
    %p81 = scmp.eq.s32.totalorder %s17, 1
    %p82 = por %p80, %p81
    %p83 = scmp.ne.s32.totalorder %s74, %s75
    %p84 = scmp.eq.s32.totalorder %s17, 0
    %p85 = por %p83, %p84
    %p86 = scmp.ne.s32.totalorder %s74, %s75
    %p87 = scmp.eq.s32.totalorder %s18, 1
    %p88 = por %p86, %p87
    %p90 = scmp.ne.s32.totalorder %s75, %s89
    %p91 = scmp.eq.s32.totalorder %s18, 0
    %p92 = por %p90, %p91
    %s94 = sadd.s32 %s93, 1
    %p97 = scmp.eq.s32.totalorder %s12, 1
    %p98 = scmp.ne.s32.totalorder %s93, %s95
    %p99 = scmp.eq.s32.totalorder %s12, 0
    %p100 = por %p98, %p99
    %p101 = scmp.ne.s32.totalorder %s93, %s95
    %p102 = scmp.eq.s32.totalorder %s17, 1
    %p103 = por %p101, %p102
    %p104 = scmp.ne.s32.totalorder %s95, %s96
    %p105 = scmp.eq.s32.totalorder %s17, 0
    %p106 = por %p104, %p105
    %p107 = scmp.ne.s32.totalorder %s95, %s96
    %p108 = scmp.eq.s32.totalorder %s18, 1
    %p109 = por %p107, %p108
    %p111 = scmp.ne.s32.totalorder %s96, %s110
    %p112 = scmp.eq.s32.totalorder %s18, 0
    %p113 = por %p111, %p112
    %s115 = sadd.s32 %s114, 1
    %p118 = scmp.eq.s32.totalorder %s12, 1
    %p119 = scmp.ne.s32.totalorder %s114, %s116
    %p120 = scmp.eq.s32.totalorder %s12, 0
    %p121 = por %p119, %p120
    %p122 = scmp.ne.s32.totalorder %s114, %s116
    %p123 = scmp.eq.s32.totalorder %s17, 1
    %p124 = por %p122, %p123
    %p125 = scmp.ne.s32.totalorder %s116, %s117
    %p126 = scmp.eq.s32.totalorder %s17, 0
    %p127 = por %p125, %p126
    %p128 = scmp.ne.s32.totalorder %s116, %s117
    %p129 = scmp.eq.s32.totalorder %s18, 1
    %p130 = por %p128, %p129
    %p132 = scmp.ne.s32.totalorder %s117, %s131
    %p133 = scmp.eq.s32.totalorder %s18, 0
    %p134 = por %p132, %p133
    %s135 = ssub.s32 %s12, %s19
    %p136 = scmp.eq.s32.totalorder %s135, 0
    %s138 = sadd.s32 %s137, 1
    %s139 = scalar_select %p136, %s137, %s138
    %p142 = pneg %p136
    %p143 = scmp.eq.s32.totalorder %s12, 1
    %p144 = por %p142, %p143
    %p145 = scmp.ne.s32.totalorder %s137, %s140
    %p146 = scmp.eq.s32.totalorder %s12, 0
    %p147 = por %p145, %p146
    %p148 = scmp.ne.s32.totalorder %s137, %s140
    %p149 = scmp.eq.s32.totalorder %s17, 1
    %p150 = por %p148, %p149
    %p151 = scmp.ne.s32.totalorder %s140, %s141
    %p152 = scmp.eq.s32.totalorder %s17, 0
    %p153 = por %p151, %p152
    %p154 = scmp.ne.s32.totalorder %s140, %s141
    %p155 = scmp.eq.s32.totalorder %s18, 1
    %p156 = por %p154, %p155
    %p158 = scmp.ne.s32.totalorder %s141, %s157
    %p159 = scmp.eq.s32.totalorder %s18, 0
    %p160 = por %p158, %p159
    %p161 = scmp.le.s32.totalorder 1, %s12
    %p162 = scmp.lt.s32.totalorder %s12, 3
    %p163 = pnand %p161, %p162
    %p164 = pneg %p163
    // Predicated region
    $region9: #{kam_forward.1} parent=5 // pred_check
      _
    $region10: #{kam_forward.1} parent=5 // pred_check_branch
      %166 = sbr.rel (%p163) target = $region12
    $region11: #{kam_forward.1} parent=5 // pred_region
      %s167 = ssub.s32 %s12, 1
      // Predicated region
      $region13: #{kam_forward.1} parent=11 // pred_check
        %p168 = pneg %p85
      $region14: #{kam_forward.1} parent=11 // pred_check_branch
        %170 = sbr.rel (%p168) target = $region16
      $region15: #{kam_forward.1} parent=11 // pred_region
        _
      $region16: #{kam_forward.1} parent=11 // pred_fallthru
        _
      // Predicated region
      $region17: #{kam_forward.1} parent=11 // pred_check
        %p171 = pneg %p106
      $region18: #{kam_forward.1} parent=11 // pred_check_branch
        %173 = sbr.rel (%p171) target = $region20
      $region19: #{kam_forward.1} parent=11 // pred_region
        _
      $region20: #{kam_forward.1} parent=11 // pred_fallthru
        _
      // Predicated region
      $region21: #{kam_forward.1} parent=11 // pred_check
        %p174 = pneg %p127
      $region22: #{kam_forward.1} parent=11 // pred_check_branch
        %176 = sbr.rel (%p174) target = $region24
      $region23: #{kam_forward.1} parent=11 // pred_region
        _
      $region24: #{kam_forward.1} parent=11 // pred_fallthru
        _
    $region12: #{kam_forward.1} parent=5 // pred_fallthru
      _
    %p177 = scmp.lt.s32.totalorder %s12, 2
    // Predicated region
    $region25: #{kam_forward.1} parent=5 // pred_check
      %p178 = pneg %p177
    $region26: #{kam_forward.1} parent=5 // pred_check_branch
      %180 = sbr.rel (%p178) target = $region28
    $region27: #{kam_forward.1} parent=5 // pred_region
      // Predicated region
      $region29: #{kam_forward.1} parent=27 // pred_check
        %p181 = pneg %p32
      $region30: #{kam_forward.1} parent=27 // pred_check_branch
        %183 = sbr.rel (%p181) target = $region32
      $region31: #{kam_forward.1} parent=27 // pred_region
        %p184 = scmp.lt.s32.totalorder %s12, 1
        %s185 = scalar_select %p184, %s12, 1
        %s186 = smul.addr %s185, 2
        %s187 = smul.addr %s186, 8
        %s188 = scalar_lea.vmem %s0, %s187
      $region32: #{kam_forward.1} parent=27 // pred_fallthru
        _
      // Predicated region
      $region33: #{kam_forward.1} parent=27 // pred_check
        %p189 = pneg %p58
      $region34: #{kam_forward.1} parent=27 // pred_check_branch
        %191 = sbr.rel (%p189) target = $region36
      $region35: #{kam_forward.1} parent=27 // pred_region
        %p192 = scmp.lt.s32.totalorder %s12, 1
        %s193 = scalar_select %p192, %s12, 1
        %s194 = smul.addr %s193, 10
        %s195 = smul.addr %s194, 8
        %s196 = scalar_lea.vmem %s1, %s195
      $region36: #{kam_forward.1} parent=27 // pred_fallthru
        _
    $region28: #{kam_forward.1} parent=5 // pred_fallthru
      _
    %p197 = scmp.le.s32.totalorder 1, %s12
    %p198 = scmp.lt.s32.totalorder %s12, 3
    %p199 = pnand %p197, %p198
    %p200 = pneg %p199
    // Predicated region
    $region37: #{kam_forward.1} parent=5 // pred_check
      _
    $region38: #{kam_forward.1} parent=5 // pred_check_branch
      %202 = sbr.rel (%p199) target = $region40
    $region39: #{kam_forward.1} parent=5 // pred_region
      %s203 = ssub.s32 %s12, 1
      %p204 = scmp.lt.s32.totalorder %s17, 1
      %s205 = scalar_select %p204, %s17, 1
      %s206 = smul.addr %s205, 2
      %s207 = smul.addr %s206, 8
      %s208 = scalar_lea.vmem %s0, %s207
      %p209 = pneg %p38
      %p210 = pneg %p35
      %p211 = scmp.lt.s32.totalorder %s17, 1
      %s212 = scalar_select %p211, %s17, 1
      %s213 = smul.addr %s212, 10
      %s214 = smul.addr %s213, 8
      %s215 = scalar_lea.vmem %s1, %s214
      %p216 = pneg %p64
      %p217 = pneg %p61
      %p218 = pneg %p85
      %p219 = pneg %p82
      %p220 = pneg %p106
      %p221 = pneg %p103
      %p222 = pneg %p127
      %p223 = pneg %p124
      %p224 = pneg %p153
      %p225 = pneg %p150
      %p226 = scmp.lt.s32.totalorder %s17, 1
      %s227 = scalar_select %p226, %s17, 1
      %s228 = smul.addr %s227, 2
      %s229 = smul.addr %s228, 4
      %s230 = scalar_lea.vmem %s5, %s229
      %p231 = scmp.lt.s32.totalorder %s17, 1
      %s232 = scalar_select %p231, %s17, 1
      %s233 = smul.addr %s232, 2
      %s234 = smul.addr %s233, 8
      %s235 = scalar_lea.vmem %s0, %s234
      %p236 = scmp.lt.s32.totalorder %s17, 1
      %s237 = scalar_select %p236, %s17, 1
      %s238 = smul.addr %s237, 10
      %s239 = smul.addr %s238, 8
      %s240 = scalar_lea.vmem %s1, %s239
      %p241 = scmp.lt.s32.totalorder %s17, 1
      %s242 = scalar_select %p241, %s17, 1
      %s243 = smul.addr %s242, 2
      %s244 = smul.addr %s243, 4
      %s245 = scalar_lea.vmem %s5, %s244
      %v246 = vld [vmem:[%s235] sm:$0xff]
      %v247 = vld [vmem:[%s235 + $0x8] sm:$0xff]
      %v248 = vld [vmem:[%s2] sm:$0xff]
      %v249 = vld [vmem:[%s2 + $0x8] sm:$0xff]
      %v250 = vld [vmem:[%s2 + $0x10] sm:$0xff]
      %v251 = vld [vmem:[%s2 + $0x18] sm:$0xff]
      %v252 = vld [vmem:[%s2 + $0x20] sm:$0xf]
      %vm253 = vcmask 293888
      %v255 = vsel %vm253, %v246, 0
      %v258 = vsel %vm253, %v247, 0
      %vm260 = vcmask 1043456
      %v262 = vsel %vm260, %v252, 0
      %264 = vmatpush.msra.mxu0 0.0
      %265 = vmatpush.msra.mxu0 0.0
      %266 = vmatpush.msra.mxu0 0.0
      %267 = vmatpush.msra.mxu0 0.0
      %268 = vmatpush.msra.mxu0 0.0
      %269 = vmatpush.msra.mxu0 0.0
      %270 = vmatpush.msra.mxu0 0.0
      %271 = vmatpush.msra.mxu0 0.0
      %272 = vmatpush.msra.mxu0 0.0
      %273 = vmatpush.msra.mxu0 0.0
      %274 = vmatpush.msra.mxu0 0.0
      %275 = vmatpush.msra.mxu0 %v262
      %276 = vmatpush.msra.mxu0 %v251
      %277 = vmatpush.msra.mxu0 %v250
      %278 = vmatpush.msra.mxu0 %v249
      %279 = vmatpush.msra.mxu0 %v248
      %280 = vmatmul.f32.gmra.mxu0 %v255
      %v281 = vpop.f32.mrf.mxu0
      %v282 = vadd.f32 0.0, %v281
      %283 = vmatmul.f32.gmra.mxu0 %v258
      %v284 = vpop.f32.mrf.mxu0
      %v285 = vadd.f32 0.0, %v284
      %286 = vdwg.mxu0
      %v287 = vmul.f32 %v282, %v282
      %v288 = vmul.f32 %v285, %v285
      %vm289 = vcmask 31744
      %v290 = vsel %vm289, %v287, 0.0
      %v291 = vsel %vm289, %v288, 0.0
      %v292 = vadd.f32 %v290, %v291
      %v293 = vrot.slane %v292, 4
      %v294 = vadd.f32 %v292, %v293
      %v295 = vrot.slane %v294, 2
      %v296 = vadd.f32 %v294, %v295
      %v297 = vrot.slane %v296, 1
      %v298 = vadd.f32 %v296, %v297
      %v299 = vsel %vm289, %v298, 0.0
      %300 = vadd.xlane.f32.xlu0 %v299
      %v301 = vpop.xlane.xlu0 %300
      %vm302 = vcmask 64544
      %v303 = vsel %vm302, %v287, 0.0
      %v304 = vsel %vm302, %v288, 0.0
      %v305 = vadd.f32 %v303, %v304
      %v306 = vrot.slane %v305, 4
      %v307 = vadd.f32 %v305, %v306
      %v308 = vrot.slane %v307, 2
      %v309 = vadd.f32 %v307, %v308
      %v310 = vrot.slane %v309, 1
      %v311 = vadd.f32 %v309, %v310
      %313 = vrot.lane.b32.xlu0 %v311, 124
      %v314 = vpop.permute.xlu0 %313
      %v316 = vsel %vm289, %v314, 0.0
      %317 = vadd.xlane.f32.xlu0 %v316
      %v318 = vpop.xlane.xlu0 %317
      %v319 = vrsqrt.pop %v301
      %v320 = vmul.f32 %v319, %v301
      %v321 = vmul.f32 %v320, %v319
      %v322 = vmul.f32 0.5, %v321
      %v323 = vsub.f32 1.5, %v322
      %v324 = vmul.f32 %v319, %v323
      %v325 = vmul.f32 %v301, %v324
      %vm326 = vcmp.eq.f32.partialorder %v301, inf
      %v327 = vsel %vm326, %v301, %v325
      %vm328 = vcmp.eq.f32.partialorder %v301, 0.0
      %v329 = vand.u32 %v301, 2147483648
      %v330 = vsel %vm328, %v329, %v327
      %v331 = vmax.f32 %v330, 1e-12
      %v332 = vrcp.pop %v331
      %v333 = vmul.f32 %v331, %v332
      %v334 = vsub.f32 1.0, %v333
      %v335 = vmul.f32 %v332, %v334
      %v336 = vadd.f32 %v332, %v335
      %vm337 = vweird.f32 %v331
      %vm338 = vweird.f32 %v332
      %vm339 = vmor %vm337, %vm338
      %v340 = vsel %vm339, %v332, %v336
      %v341 = vand.u32 2147483647, %v331
      %vm342 = vcmp.eq.f32.partialorder %v341, 8.507059e+37
      %v343 = vand.u32 %v331, 2147483648
      %v344 = vor.u32 1.1754944e-38, %v343
      %v345 = vsel %vm342, %v344, %v340
      %v346 = vmul.f32 1.0, %v345
      %v347 = vmul.f32 %v282, %v346
      %v348 = vmul.f32 %v285, %v346
      %v349 = vrsqrt.pop %v318
      %v350 = vmul.f32 %v349, %v318
      %v351 = vmul.f32 %v350, %v349
      %v352 = vmul.f32 0.5, %v351
      %v353 = vsub.f32 1.5, %v352
      %v354 = vmul.f32 %v349, %v353
      %v355 = vmul.f32 %v318, %v354
      %vm356 = vcmp.eq.f32.partialorder %v318, inf
      %v357 = vsel %vm356, %v318, %v355
      %vm358 = vcmp.eq.f32.partialorder %v318, 0.0
      %v359 = vand.u32 %v318, 2147483648
      %v360 = vsel %vm358, %v359, %v357
      %v361 = vmax.f32 %v360, 1e-12
      %v362 = vrcp.pop %v361
      %v363 = vmul.f32 %v361, %v362
      %v364 = vsub.f32 1.0, %v363
      %v365 = vmul.f32 %v362, %v364
      %v366 = vadd.f32 %v362, %v365
      %vm367 = vweird.f32 %v361
      %vm368 = vweird.f32 %v362
      %vm369 = vmor %vm367, %vm368
      %v370 = vsel %vm369, %v362, %v366
      %v371 = vand.u32 2147483647, %v361
      %vm372 = vcmp.eq.f32.partialorder %v371, 8.507059e+37
      %v373 = vand.u32 %v361, 2147483648
      %v374 = vor.u32 1.1754944e-38, %v373
      %v375 = vsel %vm372, %v374, %v370
      %v376 = vmul.f32 1.0, %v375
      %v377 = vmul.f32 %v282, %v376
      %v378 = vmul.f32 %v285, %v376
      %381 = vrot.lane.b32.xlu0 %v377, 124
      %v382 = vpop.permute.xlu0 %381
      %383 = vrot.lane.b32.xlu0 %v378, 124
      %v384 = vpop.permute.xlu0 %383
      %387 = vxpose.xlu0.b32.start [1/16] %v382, 128
      %388 = vxpose.xlu0.b32.cont [2/16] %v384, 128
      %389 = vxpose.xlu0.b32.cont [3/16] 0.0, 128
      %390 = vxpose.xlu0.b32.cont [4/16] 0.0, 128
      %391 = vxpose.xlu0.b32.cont [5/16] 0.0, 128
      %392 = vxpose.xlu0.b32.cont [6/16] 0.0, 128
      %393 = vxpose.xlu0.b32.cont [7/16] 0.0, 128
      %394 = vxpose.xlu0.b32.cont [8/16] 0.0, 128
      %395 = vxpose.xlu0.b32.cont [9/16] 0.0, 128
      %396 = vxpose.xlu0.b32.cont [10/16] 0.0, 128
      %397 = vxpose.xlu0.b32.cont [11/16] 0.0, 128
      %398 = vxpose.xlu0.b32.cont [12/16] 0.0, 128
      %399 = vxpose.xlu0.b32.cont [13/16] 0.0, 128
      %400 = vxpose.xlu0.b32.cont [14/16] 0.0, 128
      %401 = vxpose.xlu0.b32.cont [15/16] 0.0, 128
      %402 = vxpose.xlu0.b32.end [16/16] 0.0, 128
      %v403 = vpop.trf.xlu0
      %v404 = vpop.trf.xlu0
      %v405 = vpop.trf.xlu0
      %v406 = vpop.trf.xlu0
      %v407 = vpop.trf.xlu0
      %v408 = vpop.trf.xlu0
      %v409 = vpop.trf.xlu0
      %v410 = vpop.trf.xlu0
      %v411 = vpop.trf.xlu0
      %v412 = vpop.trf.xlu0
      %v413 = vpop.trf.xlu0
      %v414 = vpop.trf.xlu0
      %v415 = vpop.trf.xlu0
      %v416 = vpop.trf.xlu0
      %v417 = vpop.trf.xlu0
      %v418 = vpop.trf.xlu0
      %419 = vst.msk [vmem:[#allocation2] sm:$0xff] %vm289, 0.0
      %420 = vst.msk [vmem:[#allocation2 + $0x8] sm:$0xff] %vm289, 0.0
      %421 = vst.msk [vmem:[#allocation2 + $0x10] sm:$0xff] %vm289, 0.0
      %422 = vst.msk [vmem:[#allocation2 + $0x18] sm:$0xff] %vm289, 0.0
      %vm423 = vcmask 27648
      %424 = vst.msk [vmem:[#allocation2 + $0x20] sm:$0xf] %vm423, 0.0
      %425 = vst.msk [vmem:[#allocation2 + $0xa] sm:$0xff] %vm289, %v347
      %426 = vst.msk [vmem:[#allocation2 + $0x12] sm:$0xff] %vm289, %v348
      %v427 = vlaneseq
      %v428 = vshrl.u32 %v427, 7
      %v429 = vadd.s32 %v428, 8
      %vm430 = vcmp.lt.s32.totalorder %v428, 0
      %v431 = vsub.s32 0, %v428
      %v432 = vsel %vm430, %v431, %v428
      %v433 = vshrl.u32 %v432, 2
      %v434 = vand.u32 %v432, 3
      %v435 = vsub.s32 0, %v434
      %v436 = vsel %vm430, %v435, %v434
      %vm437 = vcmp.lt.s32.totalorder %v429, 0
      %v438 = vsub.s32 0, %v429
      %v439 = vsel %vm437, %v438, %v429
      %v440 = vshrl.u32 %v439, 2
      %v441 = vand.u32 %v439, 3
      %v442 = vsub.s32 0, %v441
      %v443 = vsel %vm437, %v442, %v441
      %vm444 = vcmp.ne.s32.totalorder %v436, 0
      %vm445 = vcmp.ne.s32.totalorder %v443, 0
      %vm446 = vcmp.lt.s32.totalorder %v436, 0
      %vm447 = vcmp.lt.s32.totalorder %v443, 0
      %vm448 = vmand %vm446, %vm444
      %vm449 = vmand %vm447, %vm445
      %v450 = vadd.s32 %v436, 4
      %v451 = vadd.s32 %v443, 4
      %v452 = vsel %vm448, %v450, %v436
      %v453 = vsel %vm449, %v451, %v443
      %v454 = vld [vmem:[#allocation2] sm:$0xff]
      %v455 = vld [vmem:[#allocation2 + $0x8] sm:$0xff]
      %v456 = vadd.s32 %v452, 4294967294
      %v457 = vadd.s32 %v453, 4294967294
      %vm458 = vcmp.ge.s32.totalorder %v456, 0
      %vm459 = vcmp.ge.s32.totalorder %v457, 0
      %vm460 = vcmp.lt.s32.totalorder %v456, 4
      %vm461 = vcmp.lt.s32.totalorder %v457, 4
      %vm462 = vmand %vm458, %vm460
      %vm463 = vmand %vm459, %vm461
      %v464 = vsel %vm462, %v454, 0.0
      %v465 = vsel %vm463, %v455, 0.0
      %466 = vst.msk [vmem:[#allocation3] sm:$0xff] %vm289, %v464
      %467 = vst.msk [vmem:[#allocation3 + $0x8] sm:$0xff] %vm289, %v465
      %v468 = vld [vmem:[#allocation2 + $0x1] sm:$0xff]
      %v469 = vld [vmem:[#allocation2 + $0x9] sm:$0xff]
      %v470 = vadd.s32 %v452, 4294967295
      %v471 = vadd.s32 %v453, 4294967295
      %vm472 = vcmp.ge.s32.totalorder %v470, 0
      %vm473 = vcmp.ge.s32.totalorder %v471, 0
      %vm474 = vcmp.lt.s32.totalorder %v470, 4
      %vm475 = vcmp.lt.s32.totalorder %v471, 4
      %vm476 = vmand %vm472, %vm474
      %vm477 = vmand %vm473, %vm475
      %v478 = vsel %vm476, %v468, 0.0
      %v479 = vsel %vm477, %v469, 0.0
      %482 = vrot.lane.b32.xlu0 %v478, 4
      %v483 = vpop.permute.xlu0 %482
      %484 = vrot.lane.b32.xlu0 %v479, 4
      %v485 = vpop.permute.xlu0 %484
      %488 = vst.msk [vmem:[#allocation3] sm:$0xff] %vm302, %v483
      %489 = vst.msk [vmem:[#allocation3 + $0x8] sm:$0xff] %vm302, %v485
      %v490 = vld [vmem:[#allocation2 + $0x2] sm:$0xff]
      %v491 = vld [vmem:[#allocation2 + $0xa] sm:$0xff]
      %494 = vrot.lane.b32.xlu0 %v490, 8
      %v495 = vpop.permute.xlu0 %494
      %496 = vrot.lane.b32.xlu0 %v491, 8
      %v497 = vpop.permute.xlu0 %496
      %vm500 = vcmask 97344
      %501 = vst.msk [vmem:[#allocation3] sm:$0xff] %vm500, %v495
      %502 = vst.msk [vmem:[#allocation3 + $0x8] sm:$0xff] %vm500, %v497
      %v503 = vld [vmem:[#allocation2 + $0x3] sm:$0xff]
      %v504 = vld [vmem:[#allocation2 + $0xb] sm:$0xff]
      %v505 = vadd.s32 %v452, 1
      %v506 = vadd.s32 %v453, 1
      %vm507 = vcmp.ge.s32.totalorder %v505, 0
      %vm508 = vcmp.ge.s32.totalorder %v506, 0
      %vm509 = vcmp.lt.s32.totalorder %v505, 4
      %vm510 = vcmp.lt.s32.totalorder %v506, 4
      %vm511 = vmand %vm507, %vm509
      %vm512 = vmand %vm508, %vm510
      %v513 = vsel %vm511, %v503, 0.0
      %v514 = vsel %vm512, %v504, 0.0
      %517 = vrot.lane.b32.xlu0 %v513, 12
      %v518 = vpop.permute.xlu0 %517
      %519 = vrot.lane.b32.xlu0 %v514, 12
      %v520 = vpop.permute.xlu0 %519
      %vm523 = vcmask 130144
      %524 = vst.msk [vmem:[#allocation3] sm:$0xff] %vm523, %v518
      %525 = vst.msk [vmem:[#allocation3 + $0x8] sm:$0xff] %vm523, %v520
      %v526 = vld [vmem:[#allocation2 + $0x4] sm:$0xff]
      %v527 = vld [vmem:[#allocation2 + $0xc] sm:$0xff]
      %v528 = vadd.s32 %v452, 2
      %v529 = vadd.s32 %v453, 2
      %vm530 = vcmp.ge.s32.totalorder %v528, 0
      %vm531 = vcmp.ge.s32.totalorder %v529, 0
      %vm532 = vcmp.lt.s32.totalorder %v528, 4
      %vm533 = vcmp.lt.s32.totalorder %v529, 4
      %vm534 = vmand %vm530, %vm532
      %vm535 = vmand %vm531, %vm533
      %v536 = vsel %vm534, %v526, 0.0
      %v537 = vsel %vm535, %v527, 0.0
      %540 = vrot.lane.b32.xlu0 %v536, 16
      %v541 = vpop.permute.xlu0 %540
      %542 = vrot.lane.b32.xlu0 %v537, 16
      %v543 = vpop.permute.xlu0 %542
      %vm546 = vcmask 162944
      %547 = vst.msk [vmem:[#allocation3] sm:$0xff] %vm546, %v541
      %548 = vst.msk [vmem:[#allocation3 + $0x8] sm:$0xff] %vm546, %v543
      %v549 = vld [vmem:[#allocation2 + $0x4] sm:$0xff]
      %v550 = vld [vmem:[#allocation2 + $0xc] sm:$0xff]
      %v551 = vsel %vm462, %v549, 0.0
      %v552 = vsel %vm463, %v550, 0.0
      %555 = vrot.lane.b32.xlu0 %v551, 20
      %v556 = vpop.permute.xlu0 %555
      %557 = vrot.lane.b32.xlu0 %v552, 20
      %v558 = vpop.permute.xlu0 %557
      %vm561 = vcmask 195744
      %562 = vst.msk [vmem:[#allocation3] sm:$0xff] %vm561, %v556
      %563 = vst.msk [vmem:[#allocation3 + $0x8] sm:$0xff] %vm561, %v558
      %v564 = vld [vmem:[#allocation2 + $0x5] sm:$0xff]
      %v565 = vld [vmem:[#allocation2 + $0xd] sm:$0xff]
      %v566 = vsel %vm476, %v564, 0.0
      %v567 = vsel %vm477, %v565, 0.0
      %570 = vrot.lane.b32.xlu0 %v566, 24
      %v571 = vpop.permute.xlu0 %570
      %572 = vrot.lane.b32.xlu0 %v567, 24
      %v573 = vpop.permute.xlu0 %572
      %vm576 = vcmask 228544
      %577 = vst.msk [vmem:[#allocation3] sm:$0xff] %vm576, %v571
      %578 = vst.msk [vmem:[#allocation3 + $0x8] sm:$0xff] %vm576, %v573
      %v579 = vld [vmem:[#allocation2 + $0x6] sm:$0xff]
      %v580 = vld [vmem:[#allocation2 + $0xe] sm:$0xff]
      %583 = vrot.lane.b32.xlu0 %v579, 28
      %v584 = vpop.permute.xlu0 %583
      %585 = vrot.lane.b32.xlu0 %v580, 28
      %v586 = vpop.permute.xlu0 %585
      %vm589 = vcmask 261344
      %590 = vst.msk [vmem:[#allocation3] sm:$0xff] %vm589, %v584
      %591 = vst.msk [vmem:[#allocation3 + $0x8] sm:$0xff] %vm589, %v586
      %v592 = vld [vmem:[#allocation2 + $0x7] sm:$0xff]
      %v593 = vld [vmem:[#allocation2 + $0xf] sm:$0xff]
      %v594 = vsel %vm511, %v592, 0.0
      %v595 = vsel %vm512, %v593, 0.0
      %598 = vrot.lane.b32.xlu0 %v594, 32
      %v599 = vpop.permute.xlu0 %598
      %600 = vrot.lane.b32.xlu0 %v595, 32
      %v601 = vpop.permute.xlu0 %600
      %vm604 = vcmask 294144
      %605 = vst.msk [vmem:[#allocation3] sm:$0xff] %vm604, %v599
      %606 = vst.msk [vmem:[#allocation3 + $0x8] sm:$0xff] %vm604, %v601
      %v607 = vld [vmem:[#allocation2 + $0x8] sm:$0xff]
      %v608 = vld [vmem:[#allocation2 + $0x10] sm:$0xff]
      %v609 = vsel %vm534, %v607, 0.0
      %v610 = vsel %vm535, %v608, 0.0
      %613 = vrot.lane.b32.xlu0 %v609, 36
      %v614 = vpop.permute.xlu0 %613
      %615 = vrot.lane.b32.xlu0 %v610, 36
      %v616 = vpop.permute.xlu0 %615
      %vm619 = vcmask 326944
      %620 = vst.msk [vmem:[#allocation3] sm:$0xff] %vm619, %v614
      %621 = vst.msk [vmem:[#allocation3 + $0x8] sm:$0xff] %vm619, %v616
      %v622 = vld [vmem:[#allocation2 + $0x8] sm:$0xff]
      %v623 = vld [vmem:[#allocation2 + $0x10] sm:$0xff]
      %v624 = vsel %vm462, %v622, 0.0
      %v625 = vsel %vm463, %v623, 0.0
      %628 = vrot.lane.b32.xlu0 %v624, 40
      %v629 = vpop.permute.xlu0 %628
      %630 = vrot.lane.b32.xlu0 %v625, 40
      %v631 = vpop.permute.xlu0 %630
      %vm634 = vcmask 359744
      %635 = vst.msk [vmem:[#allocation3] sm:$0xff] %vm634, %v629
      %636 = vst.msk [vmem:[#allocation3 + $0x8] sm:$0xff] %vm634, %v631
      %v637 = vld [vmem:[#allocation2 + $0x9] sm:$0xff]
      %v638 = vld [vmem:[#allocation2 + $0x11] sm:$0xff]
      %v639 = vsel %vm476, %v637, 0.0
      %v640 = vsel %vm477, %v638, 0.0
      %643 = vrot.lane.b32.xlu0 %v639, 44
      %v644 = vpop.permute.xlu0 %643
      %645 = vrot.lane.b32.xlu0 %v640, 44
      %v646 = vpop.permute.xlu0 %645
      %vm649 = vcmask 392544
      %650 = vst.msk [vmem:[#allocation3] sm:$0xff] %vm649, %v644
      %651 = vst.msk [vmem:[#allocation3 + $0x8] sm:$0xff] %vm649, %v646
      %v652 = vld [vmem:[#allocation2 + $0xa] sm:$0xff]
      %v653 = vld [vmem:[#allocation2 + $0x12] sm:$0xff]
      %656 = vrot.lane.b32.xlu0 %v652, 48
      %v657 = vpop.permute.xlu0 %656
      %658 = vrot.lane.b32.xlu0 %v653, 48
      %v659 = vpop.permute.xlu0 %658
      %vm662 = vcmask 425344
      %663 = vst.msk [vmem:[#allocation3] sm:$0xff] %vm662, %v657
      %664 = vst.msk [vmem:[#allocation3 + $0x8] sm:$0xff] %vm662, %v659
      %v665 = vld [vmem:[#allocation2 + $0xb] sm:$0xff]
      %v666 = vld [vmem:[#allocation2 + $0x13] sm:$0xff]
      %v667 = vsel %vm511, %v665, 0.0
      %v668 = vsel %vm512, %v666, 0.0
      %671 = vrot.lane.b32.xlu0 %v667, 52
      %v672 = vpop.permute.xlu0 %671
      %673 = vrot.lane.b32.xlu0 %v668, 52
      %v674 = vpop.permute.xlu0 %673
      %vm677 = vcmask 458144
      %678 = vst.msk [vmem:[#allocation3] sm:$0xff] %vm677, %v672
      %679 = vst.msk [vmem:[#allocation3 + $0x8] sm:$0xff] %vm677, %v674
      %v680 = vld [vmem:[#allocation2 + $0xc] sm:$0xff]
      %v681 = vld [vmem:[#allocation2 + $0x14] sm:$0xff]
      %v682 = vsel %vm534, %v680, 0.0
      %v683 = vsel %vm535, %v681, 0.0
      %686 = vrot.lane.b32.xlu0 %v682, 56
      %v687 = vpop.permute.xlu0 %686
      %688 = vrot.lane.b32.xlu0 %v683, 56
      %v689 = vpop.permute.xlu0 %688
      %vm692 = vcmask 490944
      %693 = vst.msk [vmem:[#allocation3] sm:$0xff] %vm692, %v687
      %694 = vst.msk [vmem:[#allocation3 + $0x8] sm:$0xff] %vm692, %v689
      %v695 = vld [vmem:[#allocation2 + $0xc] sm:$0xff]
      %v696 = vld [vmem:[#allocation2 + $0x14] sm:$0xff]
      %v697 = vsel %vm462, %v695, 0.0
      %v698 = vsel %vm463, %v696, 0.0
      %701 = vrot.lane.b32.xlu0 %v697, 60
      %v702 = vpop.permute.xlu0 %701
      %703 = vrot.lane.b32.xlu0 %v698, 60
      %v704 = vpop.permute.xlu0 %703
      %vm707 = vcmask 523744
      %708 = vst.msk [vmem:[#allocation3] sm:$0xff] %vm707, %v702
      %709 = vst.msk [vmem:[#allocation3 + $0x8] sm:$0xff] %vm707, %v704
      %v710 = vld [vmem:[#allocation2 + $0xd] sm:$0xff]
      %v711 = vld [vmem:[#allocation2 + $0x15] sm:$0xff]
      %v712 = vsel %vm476, %v710, 0.0
      %v713 = vsel %vm477, %v711, 0.0
      %716 = vrot.lane.b32.xlu0 %v712, 64
      %v717 = vpop.permute.xlu0 %716
      %718 = vrot.lane.b32.xlu0 %v713, 64
      %v719 = vpop.permute.xlu0 %718
      %vm722 = vcmask 556544
      %723 = vst.msk [vmem:[#allocation3] sm:$0xff] %vm722, %v717
      %724 = vst.msk [vmem:[#allocation3 + $0x8] sm:$0xff] %vm722, %v719
      %v725 = vld [vmem:[#allocation2 + $0xe] sm:$0xff]
      %v726 = vld [vmem:[#allocation2 + $0x16] sm:$0xff]
      %729 = vrot.lane.b32.xlu0 %v725, 68
      %v730 = vpop.permute.xlu0 %729
      %731 = vrot.lane.b32.xlu0 %v726, 68
      %v732 = vpop.permute.xlu0 %731
      %vm735 = vcmask 589344
      %736 = vst.msk [vmem:[#allocation3] sm:$0xff] %vm735, %v730
      %737 = vst.msk [vmem:[#allocation3 + $0x8] sm:$0xff] %vm735, %v732
      %v738 = vld [vmem:[#allocation2 + $0xf] sm:$0xff]
      %v739 = vld [vmem:[#allocation2 + $0x17] sm:$0xff]
      %v740 = vsel %vm511, %v738, 0.0
      %v741 = vsel %vm512, %v739, 0.0
      %744 = vrot.lane.b32.xlu0 %v740, 72
      %v745 = vpop.permute.xlu0 %744
      %746 = vrot.lane.b32.xlu0 %v741, 72
      %v747 = vpop.permute.xlu0 %746
      %vm750 = vcmask 622144
      %751 = vst.msk [vmem:[#allocation3] sm:$0xff] %vm750, %v745
      %752 = vst.msk [vmem:[#allocation3 + $0x8] sm:$0xff] %vm750, %v747
      %v753 = vld [vmem:[#allocation2 + $0x10] sm:$0xff]
      %v754 = vld [vmem:[#allocation2 + $0x18] sm:$0xff]
      %v755 = vsel %vm534, %v753, 0.0
      %v756 = vsel %vm535, %v754, 0.0
      %759 = vrot.lane.b32.xlu0 %v755, 76
      %v760 = vpop.permute.xlu0 %759
      %761 = vrot.lane.b32.xlu0 %v756, 76
      %v762 = vpop.permute.xlu0 %761
      %vm765 = vcmask 654944
      %766 = vst.msk [vmem:[#allocation3] sm:$0xff] %vm765, %v760
      %767 = vst.msk [vmem:[#allocation3 + $0x8] sm:$0xff] %vm765, %v762
      %v768 = vld [vmem:[#allocation2 + $0x10] sm:$0xff]
      %v769 = vld [vmem:[#allocation2 + $0x18] sm:$0xff]
      %v770 = vsel %vm462, %v768, 0.0
      %v771 = vsel %vm463, %v769, 0.0
      %774 = vrot.lane.b32.xlu0 %v770, 80
      %v775 = vpop.permute.xlu0 %774
      %776 = vrot.lane.b32.xlu0 %v771, 80
      %v777 = vpop.permute.xlu0 %776
      %vm780 = vcmask 687744
      %781 = vst.msk [vmem:[#allocation3] sm:$0xff] %vm780, %v775
      %782 = vst.msk [vmem:[#allocation3 + $0x8] sm:$0xff] %vm780, %v777
      %v783 = vld [vmem:[#allocation2 + $0x11] sm:$0xff]
      %v784 = vld [vmem:[#allocation2 + $0x19] sm:$0xff]
      %v785 = vsel %vm476, %v783, 0.0
      %v786 = vsel %vm477, %v784, 0.0
      %789 = vrot.lane.b32.xlu0 %v785, 84
      %v790 = vpop.permute.xlu0 %789
      %791 = vrot.lane.b32.xlu0 %v786, 84
      %v792 = vpop.permute.xlu0 %791
      %vm795 = vcmask 720544
      %796 = vst.msk [vmem:[#allocation3] sm:$0xff] %vm795, %v790
      %797 = vst.msk [vmem:[#allocation3 + $0x8] sm:$0xff] %vm795, %v792
      %v798 = vld [vmem:[#allocation2 + $0x12] sm:$0xff]
      %v799 = vld [vmem:[#allocation2 + $0x1a] sm:$0xff]
      %802 = vrot.lane.b32.xlu0 %v798, 88
      %v803 = vpop.permute.xlu0 %802
      %804 = vrot.lane.b32.xlu0 %v799, 88
      %v805 = vpop.permute.xlu0 %804
      %vm808 = vcmask 753344
      %809 = vst.msk [vmem:[#allocation3] sm:$0xff] %vm808, %v803
      %810 = vst.msk [vmem:[#allocation3 + $0x8] sm:$0xff] %vm808, %v805
      %v811 = vld [vmem:[#allocation2 + $0x13] sm:$0xff]
      %v812 = vld [vmem:[#allocation2 + $0x1b] sm:$0xff]
      %v813 = vsel %vm511, %v811, 0.0
      %v814 = vsel %vm512, %v812, 0.0
      %817 = vrot.lane.b32.xlu0 %v813, 92
      %v818 = vpop.permute.xlu0 %817
      %819 = vrot.lane.b32.xlu0 %v814, 92
      %v820 = vpop.permute.xlu0 %819
      %vm823 = vcmask 786144
      %824 = vst.msk [vmem:[#allocation3] sm:$0xff] %vm823, %v818
      %825 = vst.msk [vmem:[#allocation3 + $0x8] sm:$0xff] %vm823, %v820
      %v826 = vld [vmem:[#allocation2 + $0x14] sm:$0xff]
      %v827 = vld [vmem:[#allocation2 + $0x1c] sm:$0xff]
      %v828 = vsel %vm534, %v826, 0.0
      %v829 = vsel %vm535, %v827, 0.0
      %832 = vrot.lane.b32.xlu0 %v828, 96
      %v833 = vpop.permute.xlu0 %832
      %834 = vrot.lane.b32.xlu0 %v829, 96
      %v835 = vpop.permute.xlu0 %834
      %vm838 = vcmask 818944
      %839 = vst.msk [vmem:[#allocation3] sm:$0xff] %vm838, %v833
      %840 = vst.msk [vmem:[#allocation3 + $0x8] sm:$0xff] %vm838, %v835
      %v841 = vld [vmem:[#allocation3] sm:$0xff]
      %v842 = vld [vmem:[#allocation3 + $0x8] sm:$0xff]
      %vm843 = vcmask 130048
      %v845 = vsel %vm843, %v403, 0
      %847 = vmatpush.msra.mxu0 0.0
      %848 = vmatpush.msra.mxu0 0.0
      %849 = vmatpush.msra.mxu0 0.0
      %850 = vmatpush.msra.mxu0 0.0
      %851 = vmatpush.msra.mxu0 0.0
      %852 = vmatpush.msra.mxu0 0.0
      %853 = vmatpush.msra.mxu0 0.0
      %854 = vmatpush.msra.mxu0 0.0
      %855 = vmatpush.msra.mxu0 0.0
      %856 = vmatpush.msra.mxu0 0.0
      %857 = vmatpush.msra.mxu0 0.0
      %858 = vmatpush.msra.mxu0 0.0
      %859 = vmatpush.msra.mxu0 0.0
      %860 = vmatpush.msra.mxu0 0.0
      %861 = vmatpush.msra.mxu0 %v842
      %862 = vmatpush.msra.mxu0 %v841
      %863 = vmatmul.f32.gmra.mxu0 %v845
      %v864 = vpop.f32.mrf.mxu0
      %v865 = vadd.f32 0.0, %v864
      %866 = vdwg.mxu0
      %vm867 = vcmask 93184
      %868 = vst.msk [vmem:[#allocation4] sm:$0xf] %vm867, %v865
      %870 = vrot.lane.b32.xlu0 %v865, 120
      %v871 = vpop.permute.xlu0 %870
      %vm873 = vcmask 191584
      %874 = vst.msk [vmem:[#allocation4] sm:$0xf] %vm873, %v871
      %875 = vrot.lane.b32.xlu0 %v865, 112
      %v876 = vpop.permute.xlu0 %875
      %vm878 = vcmask 289984
      %879 = vst.msk [vmem:[#allocation4] sm:$0xf] %vm878, %v876
      %880 = vrot.lane.b32.xlu0 %v865, 124
      %v881 = vpop.permute.xlu0 %880
      %883 = vst.msk [vmem:[#allocation4 + $0x4] sm:$0xf] %vm867, %v881
      %884 = vrot.lane.b32.xlu0 %v865, 116
      %v885 = vpop.permute.xlu0 %884
      %887 = vst.msk [vmem:[#allocation4 + $0x4] sm:$0xf] %vm873, %v885
      %888 = vrot.lane.b32.xlu0 %v865, 108
      %v889 = vpop.permute.xlu0 %888
      %891 = vst.msk [vmem:[#allocation4 + $0x4] sm:$0xf] %vm878, %v889
      %892 = vst.msk [vmem:[#allocation4 + $0x8] sm:$0xf] %vm867, %v871
      %893 = vst.msk [vmem:[#allocation4 + $0x8] sm:$0xf] %vm873, %v876
      %894 = vrot.lane.b32.xlu0 %v865, 104
      %v895 = vpop.permute.xlu0 %894
      %897 = vst.msk [vmem:[#allocation4 + $0x8] sm:$0xf] %vm878, %v895
      %898 = vst.msk [vmem:[#allocation4 + $0xc] sm:$0xf] %vm867, %v889
      %899 = vrot.lane.b32.xlu0 %v865, 100
      %v900 = vpop.permute.xlu0 %899
      %902 = vst.msk [vmem:[#allocation4 + $0xc] sm:$0xf] %vm873, %v900
      %903 = vrot.lane.b32.xlu0 %v865, 92
      %v904 = vpop.permute.xlu0 %903
      %906 = vst.msk [vmem:[#allocation4 + $0xc] sm:$0xf] %vm878, %v904
      %907 = vst.msk [vmem:[#allocation4 + $0x10] sm:$0xf] %vm867, %v895
      %908 = vrot.lane.b32.xlu0 %v865, 96
      %v909 = vpop.permute.xlu0 %908
      %911 = vst.msk [vmem:[#allocation4 + $0x10] sm:$0xf] %vm873, %v909
      %912 = vrot.lane.b32.xlu0 %v865, 88
      %v913 = vpop.permute.xlu0 %912
      %915 = vst.msk [vmem:[#allocation4 + $0x10] sm:$0xf] %vm878, %v913
      %916 = vst.msk [vmem:[#allocation4 + $0x14] sm:$0xf] %vm867, %v900
      %917 = vst.msk [vmem:[#allocation4 + $0x14] sm:$0xf] %vm873, %v904
      %918 = vrot.lane.b32.xlu0 %v865, 84
      %v919 = vpop.permute.xlu0 %918
      %921 = vst.msk [vmem:[#allocation4 + $0x14] sm:$0xf] %vm878, %v919
      %922 = vst.msk [vmem:[#allocation4 + $0x18] sm:$0xf] %vm867, %v913
      %923 = vrot.lane.b32.xlu0 %v865, 80
      %v924 = vpop.permute.xlu0 %923
      %926 = vst.msk [vmem:[#allocation4 + $0x18] sm:$0xf] %vm873, %v924
      %927 = vrot.lane.b32.xlu0 %v865, 72
      %v928 = vpop.permute.xlu0 %927
      %930 = vst.msk [vmem:[#allocation4 + $0x18] sm:$0xf] %vm878, %v928
      %931 = vst.msk [vmem:[#allocation4 + $0x1c] sm:$0xf] %vm867, %v919
      %932 = vrot.lane.b32.xlu0 %v865, 76
      %v933 = vpop.permute.xlu0 %932
      %935 = vst.msk [vmem:[#allocation4 + $0x1c] sm:$0xf] %vm873, %v933
      %936 = vrot.lane.b32.xlu0 %v865, 68
      %v937 = vpop.permute.xlu0 %936
      %939 = vst.msk [vmem:[#allocation4 + $0x1c] sm:$0xf] %vm878, %v937
      %940 = vst.msk [vmem:[#allocation4 + $0x20] sm:$0xf] %vm867, %v924
      %941 = vst.msk [vmem:[#allocation4 + $0x20] sm:$0xf] %vm873, %v928
      %942 = vrot.lane.b32.xlu0 %v865, 64
      %v943 = vpop.permute.xlu0 %942
      %945 = vst.msk [vmem:[#allocation4 + $0x20] sm:$0xf] %vm878, %v943
      %v946 = vld [vmem:[#allocation4] sm:$0xff]
      %v947 = vld [vmem:[#allocation4 + $0x8] sm:$0xff]
      %v948 = vld [vmem:[#allocation4 + $0x10] sm:$0xff]
      %v949 = vld [vmem:[#allocation4 + $0x18] sm:$0xff]
      %v950 = vld [vmem:[#allocation4 + $0x20] sm:$0xf]
      %v951 = vld [vmem:[%s3] sm:$0xff]
      %v952 = vld [vmem:[%s3 + $0x8] sm:$0xff]
      %v953 = vld [vmem:[%s3 + $0x10] sm:$0xff]
      %v954 = vld [vmem:[%s3 + $0x18] sm:$0xff]
      %v955 = vld [vmem:[%s3 + $0x20] sm:$0xf]
      %v957 = vsel %vm253, %v946, 0
      %v960 = vsel %vm253, %v947, 0
      %v963 = vsel %vm253, %v948, 0
      %v966 = vsel %vm253, %v949, 0
      %v969 = vsel %vm253, %v950, 0
      %v972 = vsel %vm260, %v955, 0
      %974 = vmatpush.msra.mxu0 0.0
      %975 = vmatpush.msra.mxu0 0.0
      %976 = vmatpush.msra.mxu0 0.0
      %977 = vmatpush.msra.mxu0 0.0
      %978 = vmatpush.msra.mxu0 0.0
      %979 = vmatpush.msra.mxu0 0.0
      %980 = vmatpush.msra.mxu0 0.0
      %981 = vmatpush.msra.mxu0 0.0
      %982 = vmatpush.msra.mxu0 0.0
      %983 = vmatpush.msra.mxu0 0.0
      %984 = vmatpush.msra.mxu0 0.0
      %985 = vmatpush.msra.mxu0 %v972
      %986 = vmatpush.msra.mxu0 %v954
      %987 = vmatpush.msra.mxu0 %v953
      %988 = vmatpush.msra.mxu0 %v952
      %989 = vmatpush.msra.mxu0 %v951
      %990 = vmatmul.f32.gmra.mxu0 %v957
      %v991 = vpop.f32.mrf.mxu0
      %v992 = vadd.f32 0.0, %v991
      %993 = vmatmul.f32.gmra.mxu0 %v960
      %v994 = vpop.f32.mrf.mxu0
      %v995 = vadd.f32 0.0, %v994
      %996 = vmatmul.f32.gmra.mxu0 %v963
      %v997 = vpop.f32.mrf.mxu0
      %v998 = vadd.f32 0.0, %v997
      %999 = vmatmul.f32.gmra.mxu0 %v966
      %v1000 = vpop.f32.mrf.mxu0
      %v1001 = vadd.f32 0.0, %v1000
      %1002 = vmatmul.f32.gmra.mxu0 %v969
      %v1003 = vpop.f32.mrf.mxu0
      %v1004 = vadd.f32 0.0, %v1003
      %1005 = vdwg.mxu0
      %v1006 = vmul.f32 %v992, %v992
      %v1007 = vmul.f32 %v995, %v995
      %v1008 = vmul.f32 %v998, %v998
      %v1009 = vmul.f32 %v1001, %v1001
      %v1010 = vmul.f32 %v1004, %v1004
      %v1011 = vsel %vm289, %v1006, 0.0
      %v1012 = vsel %vm289, %v1007, 0.0
      %v1013 = vadd.f32 %v1011, %v1012
      %v1014 = vsel %vm289, %v1008, 0.0
      %v1015 = vadd.f32 %v1013, %v1014
      %v1016 = vsel %vm289, %v1009, 0.0
      %v1017 = vadd.f32 %v1015, %v1016
      %v1018 = vsel %vm423, %v1010, 0.0
      %v1019 = vadd.f32 %v1017, %v1018
      %v1020 = vrot.slane %v1019, 4
      %v1021 = vadd.f32 %v1019, %v1020
      %v1022 = vrot.slane %v1021, 2
      %v1023 = vadd.f32 %v1021, %v1022
      %v1024 = vrot.slane %v1023, 1
      %v1025 = vadd.f32 %v1023, %v1024
      %v1026 = vrsqrt.pop %v1025
      %v1027 = vmul.f32 %v1026, %v1025
      %v1028 = vmul.f32 %v1027, %v1026
      %v1029 = vmul.f32 0.5, %v1028
      %v1030 = vsub.f32 1.5, %v1029
      %v1031 = vmul.f32 %v1026, %v1030
      %v1032 = vmul.f32 %v1025, %v1031
      %vm1033 = vcmp.eq.f32.partialorder %v1025, inf
      %v1034 = vsel %vm1033, %v1025, %v1032
      %vm1035 = vcmp.eq.f32.partialorder %v1025, 0.0
      %v1036 = vand.u32 %v1025, 2147483648
      %v1037 = vsel %vm1035, %v1036, %v1034
      %s1038 = sld [smem:[#allocation5]]
      %v1039 = vmax.f32 %v1037, 1e-12
      %v1040 = vstv %s1038
      %v1041 = vrcp.pop %v1039
      %v1042 = vmul.f32 %v1039, %v1041
      %v1043 = vsub.f32 1.0, %v1042
      %v1044 = vmul.f32 %v1041, %v1043
      %v1045 = vadd.f32 %v1041, %v1044
      %vm1046 = vweird.f32 %v1039
      %vm1047 = vweird.f32 %v1041
      %vm1048 = vmor %vm1046, %vm1047
      %v1049 = vsel %vm1048, %v1041, %v1045
      %v1050 = vand.u32 2147483647, %v1039
      %vm1051 = vcmp.eq.f32.partialorder %v1050, 8.507059e+37
      %v1052 = vand.u32 %v1039, 2147483648
      %v1053 = vor.u32 1.1754944e-38, %v1052
      %v1054 = vsel %vm1051, %v1053, %v1049
      %v1055 = vmul.f32 %v1040, %v1054
      %v1056 = vmul.f32 %v992, %v1055
      %v1057 = vmul.f32 %v995, %v1055
      %v1058 = vmul.f32 %v998, %v1055
      %v1059 = vmul.f32 %v1001, %v1055
      %v1060 = vmul.f32 %v1004, %v1055
      %v1061 = vadd.f32 %v951, %v1056
      %v1062 = vadd.f32 %v952, %v1057
      %v1063 = vadd.f32 %v953, %v1058
      %v1064 = vadd.f32 %v954, %v1059
      %v1065 = vadd.f32 %v955, %v1060
      %1066 = vxpose.xlu0.b32.start [1/16] %v1061, 128
      %1067 = vxpose.xlu0.b32.cont [2/16] %v1062, 128
      %1068 = vxpose.xlu0.b32.cont [3/16] %v1063, 128
      %1069 = vxpose.xlu0.b32.cont [4/16] %v1064, 128
      %1070 = vxpose.xlu0.b32.cont [5/16] %v1065, 128
      %1071 = vxpose.xlu0.b32.cont [6/16] 0.0, 128
      %1072 = vxpose.xlu0.b32.cont [7/16] 0.0, 128
      %1073 = vxpose.xlu0.b32.cont [8/16] 0.0, 128
      %1074 = vxpose.xlu0.b32.cont [9/16] 0.0, 128
      %1075 = vxpose.xlu0.b32.cont [10/16] 0.0, 128
      %1076 = vxpose.xlu0.b32.cont [11/16] 0.0, 128
      %1077 = vxpose.xlu0.b32.cont [12/16] 0.0, 128
      %1078 = vxpose.xlu0.b32.cont [13/16] 0.0, 128
      %1079 = vxpose.xlu0.b32.cont [14/16] 0.0, 128
      %1080 = vxpose.xlu0.b32.cont [15/16] 0.0, 128
      %1081 = vxpose.xlu0.b32.end [16/16] 0.0, 128
      %v1082 = vpop.trf.xlu0
      %v1083 = vpop.trf.xlu0
      %v1084 = vpop.trf.xlu0
      %v1085 = vpop.trf.xlu0
      %v1086 = vpop.trf.xlu0
      %v1087 = vpop.trf.xlu0
      %v1088 = vpop.trf.xlu0
      %v1089 = vpop.trf.xlu0
      %v1090 = vpop.trf.xlu0
      %v1091 = vpop.trf.xlu0
      %v1092 = vpop.trf.xlu0
      %v1093 = vpop.trf.xlu0
      %v1094 = vpop.trf.xlu0
      %v1095 = vpop.trf.xlu0
      %v1096 = vpop.trf.xlu0
      %v1097 = vpop.trf.xlu0
      %v1098 = vld [vmem:[%s240] sm:$0xff]
      %v1099 = vld [vmem:[%s240 + $0x8] sm:$0xff]
      %v1100 = vld [vmem:[%s240 + $0x10] sm:$0xff]
      %v1101 = vld [vmem:[%s240 + $0x18] sm:$0xff]
      %v1102 = vld [vmem:[%s240 + $0x20] sm:$0xff]
      %v1103 = vld [vmem:[%s240 + $0x28] sm:$0xff]
      %v1104 = vld [vmem:[%s240 + $0x30] sm:$0xff]
      %v1105 = vld [vmem:[%s240 + $0x38] sm:$0xff]
      %v1106 = vld [vmem:[%s240 + $0x40] sm:$0xf]
      %v1107 = vld [vmem:[%s240 + $0x48] sm:$0xf]
      %v1109 = vsel %vm253, %v1082, 0
      %v1112 = vsel %vm260, %v1106, 0
      %v1115 = vsel %vm260, %v1107, 0
      %1117 = vmatpush.msra.mxu0 0.0
      %1118 = vmatpush.msra.mxu0 0.0
      %1119 = vmatpush.msra.mxu0 0.0
      %1120 = vmatpush.msra.mxu0 0.0
      %1121 = vmatpush.msra.mxu0 0.0
      %1122 = vmatpush.msra.mxu0 0.0
      %1123 = vmatpush.msra.mxu0 0.0
      %1124 = vmatpush.msra.mxu0 0.0
      %1125 = vmatpush.msra.mxu0 0.0
      %1126 = vmatpush.msra.mxu0 0.0
      %1127 = vmatpush.msra.mxu0 0.0
      %1128 = vmatpush.msra.mxu0 %v1112
      %1129 = vmatpush.msra.mxu0 %v1104
      %1130 = vmatpush.msra.mxu0 %v1102
      %1131 = vmatpush.msra.mxu0 %v1100
      %1132 = vmatpush.msra.mxu0 %v1098
      %1133 = vmatmul.f32.gmra.mxu0 %v1109
      %v1134 = vpop.f32.mrf.mxu0
      %v1135 = vadd.f32 0.0, %v1134
      %1136 = vdwg.mxu0
      %1137 = vmatpush.msra.mxu0 0.0
      %1138 = vmatpush.msra.mxu0 0.0
      %1139 = vmatpush.msra.mxu0 0.0
      %1140 = vmatpush.msra.mxu0 0.0
      %1141 = vmatpush.msra.mxu0 0.0
      %1142 = vmatpush.msra.mxu0 0.0
      %1143 = vmatpush.msra.mxu0 0.0
      %1144 = vmatpush.msra.mxu0 0.0
      %1145 = vmatpush.msra.mxu0 0.0
      %1146 = vmatpush.msra.mxu0 0.0
      %1147 = vmatpush.msra.mxu0 0.0
      %1148 = vmatpush.msra.mxu0 %v1115
      %1149 = vmatpush.msra.mxu0 %v1105
      %1150 = vmatpush.msra.mxu0 %v1103
      %1151 = vmatpush.msra.mxu0 %v1101
      %1152 = vmatpush.msra.mxu0 %v1099
      %1153 = vmatmul.f32.gmra.mxu0 %v1109
      %v1154 = vpop.f32.mrf.mxu0
      %v1155 = vadd.f32 0.0, %v1154
      %1156 = vdwg.mxu0
      %v1157 = vmax.f32 %v1135, 0.0
      %v1158 = vmax.f32 %v1155, 0.0
      %v1161 = vrot.slane %v1158, 4
      %v1162 = vsel %vm260, %v1157, %v1161
      %vm1164 = vcmask 130052
      %vm1165 = vmor %vm1164, %vm260
      %1166 = vst.msk [vmem:[%s245] sm:$0xff] %vm1165, %v1162
      %p1167 = scmp.lt.s32.totalorder %s17, 1
      %s1168 = scalar_select %p1167, %s17, 1
      %s1169 = smul.addr %s1168, 2
      %s1170 = smul.addr %s1169, 4
      %s1171 = scalar_lea.vmem %s5, %s1170
      // Predicated region
      $region41: #{kam_forward.1} parent=39 // pred_check
        %p1172 = pneg %p150
      $region42: #{kam_forward.1} parent=39 // pred_check_branch
        %1174 = sbr.rel (%p1172) target = $region44
      $region43: #{kam_forward.1} parent=39 // pred_region
        _
      $region44: #{kam_forward.1} parent=39 // pred_fallthru
        _
    $region40: #{kam_forward.1} parent=5 // pred_fallthru
      _
    %p1175 = scmp.le.s32.totalorder 2, %s12
    // Predicated region
    $region45: #{kam_forward.1} parent=5 // pred_check
      %p1176 = pneg %p1175
    $region46: #{kam_forward.1} parent=5 // pred_check_branch
      %1178 = sbr.rel (%p1176) target = $region48
    $region47: #{kam_forward.1} parent=5 // pred_region
      %s1179 = ssub.s32 %s12, 2
      // Predicated region
      $region49: #{kam_forward.1} parent=47 // pred_check
        %p1180 = pneg %p156
      $region50: #{kam_forward.1} parent=47 // pred_check_branch
        %1182 = sbr.rel (%p1180) target = $region52
      $region51: #{kam_forward.1} parent=47 // pred_region
        %p1183 = scmp.lt.s32.totalorder %s18, 1
        %s1184 = scalar_select %p1183, %s18, 1
        %s1185 = smul.addr %s1184, 2
        %s1186 = smul.addr %s1185, 4
        %s1187 = scalar_lea.vmem %s5, %s1186
      $region52: #{kam_forward.1} parent=47 // pred_fallthru
        _
    $region48: #{kam_forward.1} parent=5 // pred_fallthru
      _
  $region6: #{kam_forward.1} parent=0 // loop_footer
    %s16 = sadd.s32 1, %s12
  $region7: #{kam_forward.1} parent=0 // loop_footer_branch
    %11 = sbr.rel target = $region3
  $region8: #{kam_forward.1} parent=0 // loop_exit
    _

</llo_original>
